<compile_context>
chip_gen: v7x
topology: tpu7x:2x2x1
jax: 0.10.0
libtpu: 0.0.40
codegen_flags: <defaults>
</compile_context>

<pallas_src>
import functools

import jax
import jax.numpy as jnp
from jax.experimental import pallas as pl
from jax.experimental.pallas import tpu as pltpu


def _round_up(v, m):
    return (v + m - 1) // m * m


# ----------------------------- Pallas kernel ------------------------------ #
def _conv_bn_relu_kernel(x_ref, w_ref, shift_ref, o_ref, *,
                         ksize, owp, stride, rg, n_groups, toh):
    """Fused 7x7 conv + BN affine + ReLU for one (image, OC-tile, OH-tile).

    x_ref:     (1, R, 7*C)        kw-folded, padded, flattened image (bf16)
    w_ref:     (ksize, 7*C, tn)   BN-scaled weight slab per kh tap (bf16)
    shift_ref: (1, tn)            fused conv-bias + BN shift (f32)
    o_ref:     (1, toh*owp, tn)   output rows, flat (oh, ow) layout (f32)
    """
    i = pl.program_id(2)               # OH-tile index (innermost grid axis)
    tn = o_ref.shape[-1]
    rows = rg * owp                    # flat rows per register-resident group
    shift = shift_ref[...]             # (1, tn)

    def group_body(g, carry):
        oh0 = i * toh + g * rg         # first output row of this group

        def tap_body(kh, acc):
            # First padded-input row needed by tap kh; for stride > 1 each
            # group is a single output row, so the slice is always contiguous
            # and starts at a multiple of owp (itself a multiple of 8).
            row0 = oh0 * stride + kh
            start = pl.multiple_of(row0 * owp, 8)
            a = x_ref[0, pl.ds(start, rows), :]            # (rows, 7*C) bf16
            return acc + jnp.dot(a, w_ref[kh],
                                 preferred_element_type=jnp.float32)

        acc = jnp.zeros((rows, tn), jnp.float32)
        acc = jax.lax.fori_loop(0, ksize, tap_body, acc, unroll=True)

        y = jnp.maximum(acc + shift, 0.0)                  # bias/BN shift + ReLU
        out0 = pl.multiple_of(g * rows, 8)
        o_ref[0, pl.ds(out0, rows), :] = y.astype(o_ref.dtype)
        return carry

    jax.lax.fori_loop(0, n_groups, group_body, 0)


def _fused_conv_bn_relu(x2, w_p, shift_p, *, ksize, owp, stride, rg, n_groups,
                        toh, oh_tiles, oc_tiles, tn):
    n, r, kc = x2.shape
    ocp = tn * oc_tiles
    out_rows = oh_tiles * toh * owp

    kernel = functools.partial(
        _conv_bn_relu_kernel, ksize=ksize, owp=owp, stride=stride, rg=rg,
        n_groups=n_groups, toh=toh)

    # VMEM budget derived from the actual (double-buffered) block sizes plus
    # headroom for matmul temporaries, instead of a hardcoded constant.
    x_bytes = r * kc * 2
    w_bytes = ksize * kc * tn * 2
    o_bytes = toh * owp * tn * 4
    need = 2 * (x_bytes + w_bytes + tn * 4 + o_bytes) + (8 << 20)
    vmem_limit = int(min(96 << 20, max(32 << 20, need)))

    flops = 2 * n * out_rows * ocp * ksize * kc
    bytes_accessed = (n * x_bytes + n * oc_tiles * ksize * kc * ocp * 2
                      + n * out_rows * ocp * 4)

    return pl.pallas_call(
        kernel,
        out_shape=jax.ShapeDtypeStruct((n, out_rows, ocp), jnp.float32),
        grid_spec=pltpu.PrefetchScalarGridSpec(
            num_scalar_prefetch=0,
            # OC-tiles before OH-tiles: the weight slab (index depends only on
            # the OC axis) stays VMEM-resident across all OH tiles.
            grid=(n, oc_tiles, oh_tiles),
            in_specs=[
                # Whole kw-folded image; its index depends only on b, so it is
                # DMA'd once per image and revisited across all (oc, oh) tiles.
                # TODO(synk): row-tile this block (manual DMA double-buffer)
                # for images whose folded size approaches v7x's 64 MiB VMEM.
                pl.BlockSpec((1, r, kc), lambda b, j, i: (b, 0, 0)),
                pl.BlockSpec((ksize, kc, tn), lambda b, j, i: (0, 0, j)),
                pl.BlockSpec((1, tn), lambda b, j, i: (0, j)),
            ],
            out_specs=pl.BlockSpec((1, toh * owp, tn),
                                   lambda b, j, i: (b, i, j)),
        ),
        compiler_params=pltpu.CompilerParams(
            dimension_semantics=("parallel", "parallel", "parallel"),
            vmem_limit_bytes=vmem_limit,
        ),
        cost_estimate=pl.CostEstimate(flops=flops, transcendentals=0,
                                      bytes_accessed=bytes_accessed),
    )(x2, w_p, shift_p)


# ------------------------------- module ------------------------------------ #
class BasicConv2d7x7Pallas:
    """Pallas equivalent of BasicConv2d7x7 (Conv2d(k=7) + BN(eval) + ReLU)."""

    KSIZE = 7

    def __init__(self, in_planes, out_planes, stride=1, padding=0, bn=True,
                 key=jax.random.PRNGKey(0)):
        self.in_planes = in_planes
        self.out_planes = out_planes
        self.stride = stride
        self.padding = padding
        self.use_bn = bn
        self.eps = 1e-5
        k = self.KSIZE

        kw_, kb_, kg_, kbe_, km_, kv_ = jax.random.split(key, 6)
        fan_in = in_planes * k * k
        bound = 1.0 / (fan_in ** 0.5)
        # Conv2d default init: uniform(-1/sqrt(fan_in), 1/sqrt(fan_in)).
        self.weight = jax.random.uniform(
            kw_, (out_planes, in_planes, k, k), jnp.float32, -bound, bound)
        self.bias = jax.random.uniform(
            kb_, (out_planes,), jnp.float32, -bound, bound)
        # BatchNorm2d params; deterministic non-trivial eval-mode statistics.
        # TODO(synk): training-mode BN (per-batch statistics) not implemented;
        # eval-mode running stats are folded into the weights/shift instead.
        self.gamma = 1.0 + 0.1 * jax.random.normal(kg_, (out_planes,), jnp.float32)
        self.beta = 0.1 * jax.random.normal(kbe_, (out_planes,), jnp.float32)
        self.running_mean = 0.1 * jax.random.normal(km_, (out_planes,), jnp.float32)
        self.running_var = 1.0 + 0.1 * jax.random.uniform(kv_, (out_planes,),
                                                          jnp.float32)

        # --- hoisted per-layer prep: fold conv bias + BN into (scale, shift),
        # fold scale into the weights, pack per-kh slabs with kw folded into
        # the contraction dim, pad OC to lane-dense tiles, cast bf16.
        if self.use_bn:
            scale = self.gamma / jnp.sqrt(self.running_var + self.eps)
            shift = self.beta + (self.bias - self.running_mean) * scale
        else:
            scale = jnp.ones((out_planes,), jnp.float32)
            shift = self.bias

        # tn=256 fills the 256-wide v6e/v7x MXU when OC is large; tn=128 keeps
        # padding waste low for small OC and matches v5e's 128-wide MXU.
        self.tn = 256 if out_planes >= 256 else 128
        self.ocp = _round_up(out_planes, self.tn)

        # (kh, kw*C + c, oc) weight slabs, BN scale folded in.
        w_taps = jnp.transpose(self.weight, (2, 3, 1, 0)) * scale[None, None, None, :]
        w_taps = w_taps.reshape(k, k * in_planes, out_planes)
        self.w_p = (jnp.zeros((k, k * in_planes, self.ocp), jnp.float32)
                    .at[:, :, :out_planes].set(w_taps)
                    .astype(jnp.bfloat16))
        self.shift_p = (jnp.zeros((1, self.ocp), jnp.float32)
                        .at[0, :out_planes].set(shift))

    def __call__(self, x):
        n, c, h, w = x.shape
        assert c == self.in_planes
        k, s, p = self.KSIZE, self.stride, self.padding
        oh = (h + 2 * p - k) // s + 1
        ow = (w + 2 * p - k) // s + 1
        assert oh > 0 and ow > 0

        owp = _round_up(ow, 8)          # lane-aligned output-row width
        kc = k * c                      # contraction dim per kh tap (kw folded)

        # --- tiling: rg output rows per register-resident accumulator group
        # (~128 flat rows -> ~16 f32 acc vregs per 128-lane column). stride>1
        # groups are single rows so every tap load is contiguous & aligned.
        rg = 1 if s > 1 else max(1, min(oh, 128 // owp))
        n_groups = max(1, min(pl.cdiv(oh, rg), 2048 // (rg * owp)))
        toh = rg * n_groups
        oh_pad = _round_up(oh, toh)
        oh_tiles = oh_pad // toh
        oc_tiles = self.ocp // self.tn

        hp = h + 2 * p
        hp_tot = max(hp, (oh_pad - 1) * s + k)   # rows reachable by padded tiles

        # --- activation repack (bf16 first, so all passes run at half BW):
        # NCHW -> pad -> kw-fold (width stride folded too) -> flat (Hp*OWp, 7C).
        xb = x.astype(jnp.bfloat16)
        xp = jnp.pad(xb, ((0, 0), (0, 0), (p, p), (p, p)))
        cols = [xp[:, :, :, kw: kw + (ow - 1) * s + 1: s] for kw in range(k)]
        xc = jnp.stack(cols, axis=-1)                   # (N, C, Hp, OW, k)
        xc = jnp.transpose(xc, (0, 2, 3, 4, 1))         # (N, Hp, OW, k, C)
        xc = xc.reshape(n, hp, ow, kc)
        xc = jnp.pad(xc, ((0, 0), (0, hp_tot - hp), (0, owp - ow), (0, 0)))
        x2 = xc.reshape(n, hp_tot * owp, kc)

        out_flat = _fused_conv_bn_relu(
            x2, self.w_p, self.shift_p, ksize=k, owp=owp, stride=s, rg=rg,
            n_groups=n_groups, toh=toh, oh_tiles=oh_tiles, oc_tiles=oc_tiles,
            tn=self.tn)

        out = out_flat.reshape(n, oh_pad, owp, self.ocp)
        out = out[:, :oh, :ow, :self.out_planes]
        # TODO(synk): keep NHWC (and bf16) if the consumer allows it; NCHW f32
        # is produced only to preserve the PyTorch layout contract.
        return jnp.transpose(out, (0, 3, 1, 2))


# ------------------------------ reference ---------------------------------- #
def _reference(mod: BasicConv2d7x7Pallas, x):
    y = jax.lax.conv_general_dilated(
        x, mod.weight,
        window_strides=(mod.stride, mod.stride),
        padding=[(mod.padding, mod.padding)] * 2,
        dimension_numbers=("NCHW", "OIHW", "NCHW"),
    ) + mod.bias[None, :, None, None]
    if mod.use_bn:
        y = (y - mod.running_mean[None, :, None, None]) / jnp.sqrt(
            mod.running_var[None, :, None, None] + mod.eps)
        y = y * mod.gamma[None, :, None, None] + mod.beta[None, :, None, None]
    return jnp.maximum(y, 0.0)


if __name__ == "__main__":
    key = jax.random.PRNGKey(0)
    kx, kp = jax.random.split(key)

    # Small shapes: batch=2, in_planes=4, out_planes=8, 16x16 spatial,
    # stride=1, padding=3 ("same"-style 7x7 conv -> 16x16 output).
    x = jax.random.normal(kx, (2, 4, 16, 16), jnp.float32)
    module = BasicConv2d7x7Pallas(in_planes=4, out_planes=8,
                                  stride=1, padding=3, bn=True, key=kp)

    out = module(x)
    out = jax.block_until_ready(out)

    ref = _reference(module, x)
    assert out.shape == ref.shape == (2, 8, 16, 16)
    # bf16 MXU operands (f32 accumulation): loosened tolerance vs f32 reference.
    assert jnp.allclose(out, ref, atol=3e-2, rtol=3e-2)

    print("KERNEL_OK")
</pallas_src>

<mosaic_0001>
module attributes {stable_mosaic.version = 11 : i64} {
  func.func @_conv_bn_relu_kernel(%arg0: i32, %arg1: i32, %arg2: i32, %arg3: memref<1x352x28xbf16, #tpu.memory_space<vmem>>, %arg4: memref<7x28x128xbf16, #tpu.memory_space<vmem>>, %arg5: memref<1x128xf32, #tpu.memory_space<vmem>>, %arg6: memref<1x256x128xf32, #tpu.memory_space<vmem>>) attributes {dimension_semantics = [#tpu.dimension_semantics<parallel>, #tpu.dimension_semantics<parallel>, #tpu.dimension_semantics<parallel>], iteration_bounds = array<i64: 2, 1, 1>, scalar_prefetch = 0 : i64, scratch_operands = 0 : i64, tpu.core_type = #tpu.core_type<tc>, window_params = [{transform_indices = @transform_0, window_bounds = array<i64: 1, 352, 28>}, {transform_indices = @transform_1, window_bounds = array<i64: 7, 28, 128>}, {transform_indices = @transform_2, window_bounds = array<i64: 1, 128>}, {transform_indices = @transform_3, window_bounds = array<i64: 1, 256, 128>}]} {
    %c0 = arith.constant 0 : index
    %c0_0 = arith.constant 0 : index
    %0 = vector.load %arg5[%c0, %c0_0] : memref<1x128xf32, #tpu.memory_space<vmem>>, vector<1x128xf32>
    %c0_i32 = arith.constant 0 : i32
    %c2_i32 = arith.constant 2 : i32
    %1 = arith.addi %c0_i32, %c2_i32 : i32
    %c1_i32 = arith.constant 1 : i32
    scf.for %arg7 = %c0_i32 to %1 step %c1_i32  : i32 {
      %c16_i32 = arith.constant 16 : i32
      %2 = arith.muli %arg2, %c16_i32 : i32
      %c8_i32 = arith.constant 8 : i32
      %3 = arith.muli %arg7, %c8_i32 : i32
      %4 = arith.addi %2, %3 : i32
      %cst = arith.constant 0.000000e+00 : f32
      %5 = vector.broadcast %cst : f32 to vector<128x128xf32>
      %c0_i32_2 = arith.constant 0 : i32
      %c1_i32_3 = arith.constant 1 : i32
      %6 = arith.muli %4, %c1_i32_3 : i32
      %7 = arith.addi %6, %c0_i32_2 : i32
      %c16_i32_4 = arith.constant 16 : i32
      %8 = arith.muli %7, %c16_i32_4 : i32
      %9 = tpu.assume_multiple %8, 8 : i32
      %c0_5 = arith.constant 0 : index
      %10 = arith.index_cast %9 : i32 to index
      %c0_6 = arith.constant 0 : index
      %11 = vector.load %arg3[%c0_5, %10, %c0_6] : memref<1x352x28xbf16, #tpu.memory_space<vmem>>, vector<1x128x28xbf16>
      %12 = vector.shape_cast %11 : vector<1x128x28xbf16> to vector<128x28xbf16>
      %13 = arith.index_cast %c0_i32_2 : i32 to index
      %c0_7 = arith.constant 0 : index
      %c0_8 = arith.constant 0 : index
      %14 = vector.load %arg4[%13, %c0_7, %c0_8] : memref<7x28x128xbf16, #tpu.memory_space<vmem>>, vector<1x28x128xbf16>
      %15 = vector.shape_cast %14 : vector<1x28x128xbf16> to vector<28x128xbf16>
      %cst_9 = arith.constant dense<0.000000e+00> : vector<128x128xf32>
      %16 = tpu.matmul %12, %15, %cst_9 {dimension_numbers = #tpu.dot_dimension_numbers<[1], [0], [0], [1], [0, 0, 1, 1], [], []>} : vector<128x28xbf16>, vector<28x128xbf16>, vector<128x128xf32> -> vector<128x128xf32>
      %17 = arith.addf %5, %16 : vector<128x128xf32>
      %c1_i32_10 = arith.constant 1 : i32
      %c1_i32_11 = arith.constant 1 : i32
      %18 = arith.muli %4, %c1_i32_11 : i32
      %19 = arith.addi %18, %c1_i32_10 : i32
      %c16_i32_12 = arith.constant 16 : i32
      %20 = arith.muli %19, %c16_i32_12 : i32
      %21 = tpu.assume_multiple %20, 8 : i32
      %c0_13 = arith.constant 0 : index
      %22 = arith.index_cast %21 : i32 to index
      %c0_14 = arith.constant 0 : index
      %23 = vector.load %arg3[%c0_13, %22, %c0_14] : memref<1x352x28xbf16, #tpu.memory_space<vmem>>, vector<1x128x28xbf16>
      %24 = vector.shape_cast %23 : vector<1x128x28xbf16> to vector<128x28xbf16>
      %25 = arith.index_cast %c1_i32_10 : i32 to index
      %c0_15 = arith.constant 0 : index
      %c0_16 = arith.constant 0 : index
      %26 = vector.load %arg4[%25, %c0_15, %c0_16] : memref<7x28x128xbf16, #tpu.memory_space<vmem>>, vector<1x28x128xbf16>
      %27 = vector.shape_cast %26 : vector<1x28x128xbf16> to vector<28x128xbf16>
      %cst_17 = arith.constant dense<0.000000e+00> : vector<128x128xf32>
      %28 = tpu.matmul %24, %27, %cst_17 {dimension_numbers = #tpu.dot_dimension_numbers<[1], [0], [0], [1], [0, 0, 1, 1], [], []>} : vector<128x28xbf16>, vector<28x128xbf16>, vector<128x128xf32> -> vector<128x128xf32>
      %29 = arith.addf %17, %28 : vector<128x128xf32>
      %c2_i32_18 = arith.constant 2 : i32
      %c1_i32_19 = arith.constant 1 : i32
      %30 = arith.muli %4, %c1_i32_19 : i32
      %31 = arith.addi %30, %c2_i32_18 : i32
      %c16_i32_20 = arith.constant 16 : i32
      %32 = arith.muli %31, %c16_i32_20 : i32
      %33 = tpu.assume_multiple %32, 8 : i32
      %c0_21 = arith.constant 0 : index
      %34 = arith.index_cast %33 : i32 to index
      %c0_22 = arith.constant 0 : index
      %35 = vector.load %arg3[%c0_21, %34, %c0_22] : memref<1x352x28xbf16, #tpu.memory_space<vmem>>, vector<1x128x28xbf16>
      %36 = vector.shape_cast %35 : vector<1x128x28xbf16> to vector<128x28xbf16>
      %37 = arith.index_cast %c2_i32_18 : i32 to index
      %c0_23 = arith.constant 0 : index
      %c0_24 = arith.constant 0 : index
      %38 = vector.load %arg4[%37, %c0_23, %c0_24] : memref<7x28x128xbf16, #tpu.memory_space<vmem>>, vector<1x28x128xbf16>
      %39 = vector.shape_cast %38 : vector<1x28x128xbf16> to vector<28x128xbf16>
      %cst_25 = arith.constant dense<0.000000e+00> : vector<128x128xf32>
      %40 = tpu.matmul %36, %39, %cst_25 {dimension_numbers = #tpu.dot_dimension_numbers<[1], [0], [0], [1], [0, 0, 1, 1], [], []>} : vector<128x28xbf16>, vector<28x128xbf16>, vector<128x128xf32> -> vector<128x128xf32>
      %41 = arith.addf %29, %40 : vector<128x128xf32>
      %c3_i32 = arith.constant 3 : i32
      %c1_i32_26 = arith.constant 1 : i32
      %42 = arith.muli %4, %c1_i32_26 : i32
      %43 = arith.addi %42, %c3_i32 : i32
      %c16_i32_27 = arith.constant 16 : i32
      %44 = arith.muli %43, %c16_i32_27 : i32
      %45 = tpu.assume_multiple %44, 8 : i32
      %c0_28 = arith.constant 0 : index
      %46 = arith.index_cast %45 : i32 to index
      %c0_29 = arith.constant 0 : index
      %47 = vector.load %arg3[%c0_28, %46, %c0_29] : memref<1x352x28xbf16, #tpu.memory_space<vmem>>, vector<1x128x28xbf16>
      %48 = vector.shape_cast %47 : vector<1x128x28xbf16> to vector<128x28xbf16>
      %49 = arith.index_cast %c3_i32 : i32 to index
      %c0_30 = arith.constant 0 : index
      %c0_31 = arith.constant 0 : index
      %50 = vector.load %arg4[%49, %c0_30, %c0_31] : memref<7x28x128xbf16, #tpu.memory_space<vmem>>, vector<1x28x128xbf16>
      %51 = vector.shape_cast %50 : vector<1x28x128xbf16> to vector<28x128xbf16>
      %cst_32 = arith.constant dense<0.000000e+00> : vector<128x128xf32>
      %52 = tpu.matmul %48, %51, %cst_32 {dimension_numbers = #tpu.dot_dimension_numbers<[1], [0], [0], [1], [0, 0, 1, 1], [], []>} : vector<128x28xbf16>, vector<28x128xbf16>, vector<128x128xf32> -> vector<128x128xf32>
      %53 = arith.addf %41, %52 : vector<128x128xf32>
      %c4_i32 = arith.constant 4 : i32
      %c1_i32_33 = arith.constant 1 : i32
      %54 = arith.muli %4, %c1_i32_33 : i32
      %55 = arith.addi %54, %c4_i32 : i32
      %c16_i32_34 = arith.constant 16 : i32
      %56 = arith.muli %55, %c16_i32_34 : i32
      %57 = tpu.assume_multiple %56, 8 : i32
      %c0_35 = arith.constant 0 : index
      %58 = arith.index_cast %57 : i32 to index
      %c0_36 = arith.constant 0 : index
      %59 = vector.load %arg3[%c0_35, %58, %c0_36] : memref<1x352x28xbf16, #tpu.memory_space<vmem>>, vector<1x128x28xbf16>
      %60 = vector.shape_cast %59 : vector<1x128x28xbf16> to vector<128x28xbf16>
      %61 = arith.index_cast %c4_i32 : i32 to index
      %c0_37 = arith.constant 0 : index
      %c0_38 = arith.constant 0 : index
      %62 = vector.load %arg4[%61, %c0_37, %c0_38] : memref<7x28x128xbf16, #tpu.memory_space<vmem>>, vector<1x28x128xbf16>
      %63 = vector.shape_cast %62 : vector<1x28x128xbf16> to vector<28x128xbf16>
      %cst_39 = arith.constant dense<0.000000e+00> : vector<128x128xf32>
      %64 = tpu.matmul %60, %63, %cst_39 {dimension_numbers = #tpu.dot_dimension_numbers<[1], [0], [0], [1], [0, 0, 1, 1], [], []>} : vector<128x28xbf16>, vector<28x128xbf16>, vector<128x128xf32> -> vector<128x128xf32>
      %65 = arith.addf %53, %64 : vector<128x128xf32>
      %c5_i32 = arith.constant 5 : i32
      %c1_i32_40 = arith.constant 1 : i32
      %66 = arith.muli %4, %c1_i32_40 : i32
      %67 = arith.addi %66, %c5_i32 : i32
      %c16_i32_41 = arith.constant 16 : i32
      %68 = arith.muli %67, %c16_i32_41 : i32
      %69 = tpu.assume_multiple %68, 8 : i32
      %c0_42 = arith.constant 0 : index
      %70 = arith.index_cast %69 : i32 to index
      %c0_43 = arith.constant 0 : index
      %71 = vector.load %arg3[%c0_42, %70, %c0_43] : memref<1x352x28xbf16, #tpu.memory_space<vmem>>, vector<1x128x28xbf16>
      %72 = vector.shape_cast %71 : vector<1x128x28xbf16> to vector<128x28xbf16>
      %73 = arith.index_cast %c5_i32 : i32 to index
      %c0_44 = arith.constant 0 : index
      %c0_45 = arith.constant 0 : index
      %74 = vector.load %arg4[%73, %c0_44, %c0_45] : memref<7x28x128xbf16, #tpu.memory_space<vmem>>, vector<1x28x128xbf16>
      %75 = vector.shape_cast %74 : vector<1x28x128xbf16> to vector<28x128xbf16>
      %cst_46 = arith.constant dense<0.000000e+00> : vector<128x128xf32>
      %76 = tpu.matmul %72, %75, %cst_46 {dimension_numbers = #tpu.dot_dimension_numbers<[1], [0], [0], [1], [0, 0, 1, 1], [], []>} : vector<128x28xbf16>, vector<28x128xbf16>, vector<128x128xf32> -> vector<128x128xf32>
      %77 = arith.addf %65, %76 : vector<128x128xf32>
      %c6_i32 = arith.constant 6 : i32
      %c1_i32_47 = arith.constant 1 : i32
      %78 = arith.muli %4, %c1_i32_47 : i32
      %79 = arith.addi %78, %c6_i32 : i32
      %c16_i32_48 = arith.constant 16 : i32
      %80 = arith.muli %79, %c16_i32_48 : i32
      %81 = tpu.assume_multiple %80, 8 : i32
      %c0_49 = arith.constant 0 : index
      %82 = arith.index_cast %81 : i32 to index
      %c0_50 = arith.constant 0 : index
      %83 = vector.load %arg3[%c0_49, %82, %c0_50] : memref<1x352x28xbf16, #tpu.memory_space<vmem>>, vector<1x128x28xbf16>
      %84 = vector.shape_cast %83 : vector<1x128x28xbf16> to vector<128x28xbf16>
      %85 = arith.index_cast %c6_i32 : i32 to index
      %c0_51 = arith.constant 0 : index
      %c0_52 = arith.constant 0 : index
      %86 = vector.load %arg4[%85, %c0_51, %c0_52] : memref<7x28x128xbf16, #tpu.memory_space<vmem>>, vector<1x28x128xbf16>
      %87 = vector.shape_cast %86 : vector<1x28x128xbf16> to vector<28x128xbf16>
      %cst_53 = arith.constant dense<0.000000e+00> : vector<128x128xf32>
      %88 = tpu.matmul %84, %87, %cst_53 {dimension_numbers = #tpu.dot_dimension_numbers<[1], [0], [0], [1], [0, 0, 1, 1], [], []>} : vector<128x28xbf16>, vector<28x128xbf16>, vector<128x128xf32> -> vector<128x128xf32>
      %89 = arith.addf %77, %88 : vector<128x128xf32>
      %c7_i32 = arith.constant 7 : i32
      %90 = vector.broadcast %0 : vector<1x128xf32> to vector<128x128xf32>
      %91 = arith.addf %89, %90 : vector<128x128xf32>
      %cst_54 = arith.constant 0.000000e+00 : f32
      %92 = vector.broadcast %cst_54 : f32 to vector<128x128xf32>
      %93 = arith.maximumf %91, %92 : vector<128x128xf32>
      %c128_i32 = arith.constant 128 : i32
      %94 = arith.muli %arg7, %c128_i32 : i32
      %95 = tpu.assume_multiple %94, 8 : i32
      %c0_55 = arith.constant 0 : index
      %96 = arith.index_cast %95 : i32 to index
      %c0_56 = arith.constant 0 : index
      %97 = vector.load %arg6[%c0_55, %96, %c0_56] : memref<1x256x128xf32, #tpu.memory_space<vmem>>, vector<1x128x128xf32>
      %98 = vector.shape_cast %97 : vector<1x128x128xf32> to vector<128x128xf32>
      %99 = vector.shape_cast %93 : vector<128x128xf32> to vector<1x128x128xf32>
      tpu.vector_store %arg6[%c0_55, %96, %c0_56], %99 {strides = array<i32>} : memref<1x256x128xf32, #tpu.memory_space<vmem>>, vector<1x128x128xf32>,
    }
    %c2_i32_1 = arith.constant 2 : i32
    return
  }
  func.func @transform_0(%arg0: i32, %arg1: i32, %arg2: i32) -> (i32, i32, i32) {
    %c0_i32 = arith.constant 0 : i32
    %c0_i32_0 = arith.constant 0 : i32
    %c0_i32_1 = arith.constant 0 : i32
    return %arg0, %c0_i32, %c0_i32_0 : i32, i32, i32
  }
  func.func @transform_1(%arg0: i32, %arg1: i32, %arg2: i32) -> (i32, i32, i32) {
    %c0_i32 = arith.constant 0 : i32
    %c0_i32_0 = arith.constant 0 : i32
    %c0_i32_1 = arith.constant 0 : i32
    return %c0_i32, %c0_i32_0, %arg1 : i32, i32, i32
  }
  func.func @transform_2(%arg0: i32, %arg1: i32, %arg2: i32) -> (i32, i32) {
    %c0_i32 = arith.constant 0 : i32
    %c0_i32_0 = arith.constant 0 : i32
    return %c0_i32, %arg1 : i32, i32
  }
  func.func @transform_3(%arg0: i32, %arg1: i32, %arg2: i32) -> (i32, i32, i32) {
    %c0_i32 = arith.constant 0 : i32
    return %arg0, %arg2, %arg1 : i32, i32, i32
  }
}

</mosaic_0001>

<llo_original>
// kernel: tpu_custom_call.1
$region0: #{tpu_custom_call.1}
  #allocation0 [shape = 'u32[]', space=smem, size = 0x4, offset = 0x4, fixed_abs, tag = 'smem constant byte address 0x4 - core index']
  #allocation1 [shape = 'u32[144,128]{1,0:T(1,128)}', space=vmem, size = 0x12000, scoped, tag = 'internal scratch']
  %s0 = inlined_call_operand.vmem [shape: bf16[2,352,28], index: 0, kind: input, shape index: {}]
  %s1 = inlined_call_operand.vmem [shape: bf16[7,28,128], index: 1, kind: input, shape index: {}]
  %s2 = inlined_call_operand.vmem [shape: f32[1,128], index: 2, kind: input, shape index: {}]
  %s3 = inlined_call_operand.hbm [shape: f32[2,256,128], index: 3, kind: output, shape index: {}]
  %s4 = sld [smem:[#allocation0]]
  $region52: #{tpu_custom_call.1} parent=0
    _
  %s6 = ssub.s32 1, %s4
  %s7 = scalar_select 0, %s6, %s4
  $region1: #{tpu_custom_call.1} parent=0
    #allocation2 [shape = 'u8[262144]{0}', space=vmem, size = 0x40000, scoped, tag = 'output window, operand 0']
    #allocation3 [shape = 's32[2]{0}', space=sflag, size = 0x8, scoped, tag = 'scoped memory for tpu_custom_call.1']
    %8 = vsyncpa [#allocation3], 0
    %s9 = scalar_lea.sflag [#allocation3], 1
    %10 = vsyncpa %s9, 0
    loop: start=0, step=1, limit=4
    $region2: #{tpu_custom_call.1} parent=1 // loop_pre_header
      _
    $region3: #{tpu_custom_call.1} parent=1 // loop_header
      %s12 = sphi 0, %s16
      %p13 = scmp.ge.s32.totalorder %s12, 4
      %s19 = sphi 0, %s38
      %s20 = sphi 0, %s34
      %s21 = sphi 0, %s30
      %s22 = sphi 0, %s19
      %s23 = sphi 0, %s20
      %s24 = sphi 0, %s21
      %s25 = sphi 0, %s22
      %s26 = sphi 0, %s23
      %s27 = sphi 0, %s24
      %s41 = sphi 0, %s43
      %s44 = sphi 0, %s41
      %s45 = sphi 0, %s44
      %s61 = sphi 0, %s45
      %s67 = sphi 0, %s69
      %s70 = sphi 0, %s67
      %s71 = sphi 0, %s70
      %s87 = sphi 0, %s71
      %s93 = sphi 0, %s95
      %s96 = sphi 0, %s93
      %s97 = sphi 0, %s96
      %s113 = sphi 0, %s97
      %s123 = sphi 0, %s125
      %s126 = sphi 0, %s123
      %s127 = sphi 0, %s126
      %s143 = sphi 0, %s127
    $region4: #{tpu_custom_call.1} parent=1 // loop_header_branch
      %15 = sbr.rel (%p13) target = $region8
    $region5: #{tpu_custom_call.1} parent=1 // loop_body
      %s17 = ssub.s32 %s12, 1
      %s18 = ssub.s32 %s12, 2
      %s28 = sadd.s32 1, %s21
      %p29 = scmp.ge.s32.totalorder %s28, 1
      %s30 = scalar_select %p29, 0, %s28
      %s31 = sadd.s32 1, %s20
      %s32 = scalar_select %p29, %s31, %s20
      %p33 = scmp.ge.s32.totalorder %s32, 1
      %s34 = scalar_select %p33, 0, %s32
      %s35 = sadd.s32 1, %s19
      %s36 = scalar_select %p33, %s35, %s19
      %p37 = scmp.ge.s32.totalorder %s36, 2
      %s38 = scalar_select %p37, 0, %s36
      %s39 = ssub.s32 %s19, %s38
      %p40 = scmp.eq.s32.totalorder %s39, 0
      %s42 = sadd.s32 %s41, 1
      %s43 = scalar_select %p40, %s41, %s42
      %p46 = pneg %p40
      %p47 = scmp.eq.s32.totalorder %s12, 1
      %p48 = por %p46, %p47
      %p49 = scmp.ne.s32.totalorder %s41, %s44
      %p50 = scmp.eq.s32.totalorder %s12, 0
      %p51 = por %p49, %p50
      %p52 = scmp.ne.s32.totalorder %s41, %s44
      %p53 = scmp.eq.s32.totalorder %s17, 1
      %p54 = por %p52, %p53
      %p55 = scmp.ne.s32.totalorder %s44, %s45
      %p56 = scmp.eq.s32.totalorder %s17, 0
      %p57 = por %p55, %p56
      %p58 = scmp.ne.s32.totalorder %s44, %s45
      %p59 = scmp.eq.s32.totalorder %s18, 1
      %p60 = por %p58, %p59
      %p62 = scmp.ne.s32.totalorder %s45, %s61
      %p63 = scmp.eq.s32.totalorder %s18, 0
      %p64 = por %p62, %p63
      %s65 = ssub.s32 %s20, %s34
      %p66 = scmp.eq.s32.totalorder %s65, 0
      %s68 = sadd.s32 %s67, 1
      %s69 = scalar_select %p66, %s67, %s68
      %p72 = pneg %p66
      %p73 = scmp.eq.s32.totalorder %s12, 1
      %p74 = por %p72, %p73
      %p75 = scmp.ne.s32.totalorder %s67, %s70
      %p76 = scmp.eq.s32.totalorder %s12, 0
      %p77 = por %p75, %p76
      %p78 = scmp.ne.s32.totalorder %s67, %s70
      %p79 = scmp.eq.s32.totalorder %s17, 1
      %p80 = por %p78, %p79
      %p81 = scmp.ne.s32.totalorder %s70, %s71
      %p82 = scmp.eq.s32.totalorder %s17, 0
      %p83 = por %p81, %p82
      %p84 = scmp.ne.s32.totalorder %s70, %s71
      %p85 = scmp.eq.s32.totalorder %s18, 1
      %p86 = por %p84, %p85
      %p88 = scmp.ne.s32.totalorder %s71, %s87
      %p89 = scmp.eq.s32.totalorder %s18, 0
      %p90 = por %p88, %p89
      %s91 = ssub.s32 %s20, %s34
      %p92 = scmp.eq.s32.totalorder %s91, 0
      %s94 = sadd.s32 %s93, 1
      %s95 = scalar_select %p92, %s93, %s94
      %p98 = pneg %p92
      %p99 = scmp.eq.s32.totalorder %s12, 1
      %p100 = por %p98, %p99
      %p101 = scmp.ne.s32.totalorder %s93, %s96
      %p102 = scmp.eq.s32.totalorder %s12, 0
      %p103 = por %p101, %p102
      %p104 = scmp.ne.s32.totalorder %s93, %s96
      %p105 = scmp.eq.s32.totalorder %s17, 1
      %p106 = por %p104, %p105
      %p107 = scmp.ne.s32.totalorder %s96, %s97
      %p108 = scmp.eq.s32.totalorder %s17, 0
      %p109 = por %p107, %p108
      %p110 = scmp.ne.s32.totalorder %s96, %s97
      %p111 = scmp.eq.s32.totalorder %s18, 1
      %p112 = por %p110, %p111
      %p114 = scmp.ne.s32.totalorder %s97, %s113
      %p115 = scmp.eq.s32.totalorder %s18, 0
      %p116 = por %p114, %p115
      %s117 = ssub.s32 %s19, %s38
      %s118 = ssub.s32 %s21, %s30
      %s119 = sor.u32 %s117, %s118
      %s120 = ssub.s32 %s20, %s34
      %s121 = sor.u32 %s119, %s120
      %p122 = scmp.eq.s32.totalorder %s121, 0
      %s124 = sadd.s32 %s123, 1
      %s125 = scalar_select %p122, %s123, %s124
      %p128 = pneg %p122
      %p129 = scmp.eq.s32.totalorder %s12, 1
      %p130 = por %p128, %p129
      %p131 = scmp.ne.s32.totalorder %s123, %s126
      %p132 = scmp.eq.s32.totalorder %s12, 0
      %p133 = por %p131, %p132
      %p134 = scmp.ne.s32.totalorder %s123, %s126
      %p135 = scmp.eq.s32.totalorder %s17, 1
      %p136 = por %p134, %p135
      %p137 = scmp.ne.s32.totalorder %s126, %s127
      %p138 = scmp.eq.s32.totalorder %s17, 0
      %p139 = por %p137, %p138
      %p140 = scmp.ne.s32.totalorder %s126, %s127
      %p141 = scmp.eq.s32.totalorder %s18, 1
      %p142 = por %p140, %p141
      %p144 = scmp.ne.s32.totalorder %s127, %s143
      %p145 = scmp.eq.s32.totalorder %s18, 0
      %p146 = por %p144, %p145
      %p147 = scmp.le.s32.totalorder 1, %s12
      %p148 = scmp.lt.s32.totalorder %s12, 3
      %p149 = pnand %p147, %p148
      %p150 = pneg %p149
      // Predicated region
      $region9: #{tpu_custom_call.1} parent=5 // pred_check
        _
      $region10: #{tpu_custom_call.1} parent=5 // pred_check_branch
        %152 = sbr.rel (%p149) target = $region12
      $region11: #{tpu_custom_call.1} parent=5 // pred_region
        %s153 = ssub.s32 %s12, 1
        // Predicated region
        $region13: #{tpu_custom_call.1} parent=11 // pred_check
          %p154 = pneg %p83
        $region14: #{tpu_custom_call.1} parent=11 // pred_check_branch
          %156 = sbr.rel (%p154) target = $region16
        $region15: #{tpu_custom_call.1} parent=11 // pred_region
          %p157 = scmp.lt.s32.totalorder %s23, 0
          %s158 = scalar_select %p157, %s23, 0
          %s159 = smul.addr %s158, 4
          %s160 = scalar_lea.vmem %s1, %s159
        $region16: #{tpu_custom_call.1} parent=11 // pred_fallthru
          _
        // Predicated region
        $region17: #{tpu_custom_call.1} parent=11 // pred_check
          %p161 = pneg %p109
        $region18: #{tpu_custom_call.1} parent=11 // pred_check_branch
          %163 = sbr.rel (%p161) target = $region20
        $region19: #{tpu_custom_call.1} parent=11 // pred_region
          %p164 = scmp.lt.s32.totalorder %s23, 0
          %s165 = scalar_select %p164, %s23, 0
          %s166 = scalar_lea.vmem %s2, %s165
        $region20: #{tpu_custom_call.1} parent=11 // pred_fallthru
          _
      $region12: #{tpu_custom_call.1} parent=5 // pred_fallthru
        _
      %p167 = scmp.lt.s32.totalorder %s12, 2
      // Predicated region
      $region21: #{tpu_custom_call.1} parent=5 // pred_check
        %p168 = pneg %p167
      $region22: #{tpu_custom_call.1} parent=5 // pred_check_branch
        %170 = sbr.rel (%p168) target = $region24
      $region23: #{tpu_custom_call.1} parent=5 // pred_region
        // Predicated region
        $region25: #{tpu_custom_call.1} parent=23 // pred_check
          %p171 = pneg %p51
        $region26: #{tpu_custom_call.1} parent=23 // pred_check_branch
          %173 = sbr.rel (%p171) target = $region28
        $region27: #{tpu_custom_call.1} parent=23 // pred_region
          %p174 = scmp.lt.s32.totalorder %s19, 1
          %s175 = scalar_select %p174, %s19, 1
          %s176 = smul.addr %s175, 44
          %s177 = smul.addr %s176, 4
          %s178 = scalar_lea.vmem %s0, %s177
        $region28: #{tpu_custom_call.1} parent=23 // pred_fallthru
          _
      $region24: #{tpu_custom_call.1} parent=5 // pred_fallthru
        _
      %p179 = scmp.le.s32.totalorder 1, %s12
      %p180 = scmp.lt.s32.totalorder %s12, 3
      %p181 = pnand %p179, %p180
      %p182 = pneg %p181
      // Predicated region
      $region29: #{tpu_custom_call.1} parent=5 // pred_check
        _
      $region30: #{tpu_custom_call.1} parent=5 // pred_check_branch
        %184 = sbr.rel (%p181) target = $region32
      $region31: #{tpu_custom_call.1} parent=5 // pred_region
        %s185 = ssub.s32 %s12, 1
        %p186 = scmp.lt.s32.totalorder %s22, 1
        %s187 = scalar_select %p186, %s22, 1
        %s188 = smul.addr %s187, 44
        %s189 = smul.addr %s188, 4
        %s190 = scalar_lea.vmem %s0, %s189
        %p191 = pneg %p57
        %p192 = pneg %p54
        %p193 = scmp.lt.s32.totalorder %s23, 0
        %s194 = scalar_select %p193, %s23, 0
        %s195 = smul.addr %s194, 4
        %s196 = scalar_lea.vmem %s1, %s195
        %p197 = pneg %p83
        %p198 = pneg %p80
        %p199 = scmp.lt.s32.totalorder %s23, 0
        %s200 = scalar_select %p199, %s23, 0
        %s201 = scalar_lea.vmem %s2, %s200
        %p202 = pneg %p109
        %p203 = pneg %p106
        %p204 = pneg %p139
        %p205 = pneg %p136
        %s206 = sand.u32 %s126, 1
        %s207 = scalar_lea.sflag [#allocation3], %s206
        %s208 = sand.u32 %s126, 1
        %s209 = smul.addr %s208, 256
        %s210 = scalar_lea.vmem [#allocation2], %s209
        %p211 = scmp.lt.s32.totalorder %s22, 1
        %s212 = scalar_select %p211, %s22, 1
        %s213 = smul.addr %s212, 44
        %s214 = smul.addr %s213, 4
        %s215 = scalar_lea.vmem %s0, %s214
        %p216 = scmp.lt.s32.totalorder %s23, 0
        %s217 = scalar_select %p216, %s23, 0
        %s218 = smul.addr %s217, 4
        %s219 = scalar_lea.vmem %s1, %s218
        %p220 = scmp.lt.s32.totalorder %s23, 0
        %s221 = scalar_select %p220, %s23, 0
        %s222 = scalar_lea.vmem %s2, %s221
        %s223 = smul.u32 32, %s24
        %v225 = vld [vmem:[%s222] sm:$0x1]
        loop: start=0, step=1, limit=2
        $region33: #{tpu_custom_call.1} parent=31 // loop_pre_header
          _
        $region34: #{tpu_custom_call.1} parent=31 // loop_header
          %s227 = sphi 0, %s231
          %p228 = scmp.ge.s32.totalorder %s227, 2
        $region35: #{tpu_custom_call.1} parent=31 // loop_header_branch
          %230 = sbr.rel (%p228) target = $region39
        $region36: #{tpu_custom_call.1} parent=31 // loop_body
          %s232 = smul.u32 %s24, 16
          %s233 = smul.u32 %s227, 8
          %s234 = sadd.s32 %s232, %s233
          %s235 = smul.u32 %s234, 16
          %s236 = sshra.s32 %s235, 3
          %s237 = sand.u32 %s235, 7
          %s238 = smul.addr %s236, 4
          %s239 = scalar_lea.vmem %s215, %s238
          %v240 = vld [vmem:[%s239] sm:$0xf]
          %v241 = vld [vmem:[%s239 + $0x4] sm:$0xf]
          %v242 = vld [vmem:[%s239 + $0x8] sm:$0xf]
          %v243 = vld [vmem:[%s239 + $0xc] sm:$0xf]
          %v244 = vld [vmem:[%s239 + $0x10] sm:$0xf]
          %v245 = vld [vmem:[%s239 + $0x14] sm:$0xf]
          %v246 = vld [vmem:[%s239 + $0x18] sm:$0xf]
          %v247 = vld [vmem:[%s239 + $0x1c] sm:$0xf]
          %v248 = vld [vmem:[%s239 + $0x20] sm:$0xf]
          %v249 = vld [vmem:[%s239 + $0x24] sm:$0xf]
          %v250 = vld [vmem:[%s239 + $0x28] sm:$0xf]
          %v251 = vld [vmem:[%s239 + $0x2c] sm:$0xf]
          %v252 = vld [vmem:[%s239 + $0x30] sm:$0xf]
          %v253 = vld [vmem:[%s239 + $0x34] sm:$0xf]
          %v254 = vld [vmem:[%s239 + $0x38] sm:$0xf]
          %v255 = vld [vmem:[%s239 + $0x3c] sm:$0xf]
          %v256 = vld [vmem:[%s219] sm:$0xf]
          %v257 = vld [vmem:[%s219 + $0x4] sm:$0xf]
          %v258 = vld [vmem:[%s219 + $0x8] sm:$0xf]
          %v259 = vld [vmem:[%s219 + $0xc] sm:$0x3]
          %s260 = sadd.s32 %s234, 1
          %s261 = smul.u32 %s260, 16
          %s262 = sshra.s32 %s261, 3
          %s263 = sand.u32 %s261, 7
          %s264 = smul.addr %s262, 4
          %s265 = scalar_lea.vmem %s215, %s264
          %v266 = vld [vmem:[%s265] sm:$0xf]
          %v267 = vld [vmem:[%s265 + $0x4] sm:$0xf]
          %v268 = vld [vmem:[%s265 + $0x8] sm:$0xf]
          %v269 = vld [vmem:[%s265 + $0xc] sm:$0xf]
          %v270 = vld [vmem:[%s265 + $0x10] sm:$0xf]
          %v271 = vld [vmem:[%s265 + $0x14] sm:$0xf]
          %v272 = vld [vmem:[%s265 + $0x18] sm:$0xf]
          %v273 = vld [vmem:[%s265 + $0x1c] sm:$0xf]
          %v274 = vld [vmem:[%s265 + $0x20] sm:$0xf]
          %v275 = vld [vmem:[%s265 + $0x24] sm:$0xf]
          %v276 = vld [vmem:[%s265 + $0x28] sm:$0xf]
          %v277 = vld [vmem:[%s265 + $0x2c] sm:$0xf]
          %v278 = vld [vmem:[%s265 + $0x30] sm:$0xf]
          %v279 = vld [vmem:[%s265 + $0x34] sm:$0xf]
          %v280 = vld [vmem:[%s265 + $0x38] sm:$0xf]
          %v281 = vld [vmem:[%s265 + $0x3c] sm:$0xf]
          %s282 = scalar_lea.vmem %s219, 16
          %v283 = vld [vmem:[%s282] sm:$0xf]
          %v284 = vld [vmem:[%s282 + $0x4] sm:$0xf]
          %v285 = vld [vmem:[%s282 + $0x8] sm:$0xf]
          %v286 = vld [vmem:[%s282 + $0xc] sm:$0x3]
          %v303 = vunpack.c.l.b16 %v266
          %v304 = vunpack.c.l.b16 %v267
          %v305 = vunpack.c.l.b16 %v268
          %v306 = vunpack.c.l.b16 %v269
          %v307 = vunpack.c.l.b16 %v270
          %v308 = vunpack.c.l.b16 %v271
          %v309 = vunpack.c.l.b16 %v272
          %v310 = vunpack.c.l.b16 %v273
          %v311 = vunpack.c.l.b16 %v274
          %v312 = vunpack.c.l.b16 %v275
          %v313 = vunpack.c.l.b16 %v276
          %v314 = vunpack.c.l.b16 %v277
          %v315 = vunpack.c.l.b16 %v278
          %v316 = vunpack.c.l.b16 %v279
          %v317 = vunpack.c.l.b16 %v280
          %v318 = vunpack.c.l.b16 %v281
          %v319 = vpack.c.b16 %v304, %v303
          %v320 = vpack.c.b16 %v306, %v305
          %v321 = vpack.c.b16 %v308, %v307
          %v322 = vpack.c.b16 %v310, %v309
          %v323 = vpack.c.b16 %v312, %v311
          %v324 = vpack.c.b16 %v314, %v313
          %v325 = vpack.c.b16 %v316, %v315
          %v326 = vpack.c.b16 %v318, %v317
          %v331 = vunpack.c.l.b16 %v283
          %v332 = vunpack.c.l.b16 %v284
          %v333 = vunpack.c.l.b16 %v285
          %v334 = vunpack.c.l.b16 %v286
          %v335 = vpack.c.b16 %v332, %v331
          %v336 = vpack.c.b16 %v334, %v333
          %vm338 = vcmask 228352
          %v340 = vsel %vm338, %v319, 0
          %v343 = vsel %vm338, %v320, 0
          %v346 = vsel %vm338, %v321, 0
          %v349 = vsel %vm338, %v322, 0
          %v352 = vsel %vm338, %v323, 0
          %v355 = vsel %vm338, %v324, 0
          %v358 = vsel %vm338, %v325, 0
          %v361 = vsel %vm338, %v326, 0
          %vm363 = vcmask 1045504
          %v365 = vsel %vm363, %v336, 0
          %367 = vmatprep.subr.bf16.mxu0 0
          %368 = vmatpush1.bf16.msra.mxu0 %v335
          %369 = vmatprep.subr.bf16.mxu0 0
          %370 = vmatpush1.bf16.msra.mxu0 %v365
          %371 = vmatprep.subr.bf16.mxu0 0
          %372 = vmatpush1.bf16.msra.mxu0 0
          %373 = vmatprep.subr.bf16.mxu0 0
          %374 = vmatpush1.bf16.msra.mxu0 0
          %375 = vmatprep.subr.bf16.mxu0 0
          %376 = vmatpush1.bf16.msra.mxu0 0
          %377 = vmatprep.subr.bf16.mxu0 0
          %378 = vmatpush1.bf16.msra.mxu0 0
          %379 = vmatprep.subr.bf16.mxu0 0
          %380 = vmatpush1.bf16.msra.mxu0 0
          %381 = vmatprep.subr.bf16.mxu0 0
          %382 = vmatpush1.bf16.msra.mxu0 0
          %383 = vmatprep.subr.bf16.mxu0 0
          %384 = vmatpush1.bf16.msra.mxu0 0
          %385 = vmatprep.subr.bf16.mxu0 0
          %386 = vmatpush1.bf16.msra.mxu0 0
          %387 = vmatprep.subr.bf16.mxu0 0
          %388 = vmatpush1.bf16.msra.mxu0 0
          %389 = vmatprep.subr.bf16.mxu0 0
          %390 = vmatpush1.bf16.msra.mxu0 0
          %391 = vmatprep.subr.bf16.mxu0 0
          %392 = vmatpush1.bf16.msra.mxu0 0
          %393 = vmatprep.subr.bf16.mxu0 0
          %394 = vmatpush1.bf16.msra.mxu0 0
          %395 = vmatprep.subr.bf16.mxu0 0
          %396 = vmatpush1.bf16.msra.mxu0 0
          %397 = vmatprep.subr.bf16.mxu0 0
          %398 = vmatpush1.bf16.msra.mxu0 0
          %399 = vmatprep.mubr.bf16.mxu0 0
          %400 = vmatmul.mubr.bf16.gmra.mrb[0].mxu0 %v340
          %v401 = vpop.f32.mrb[0].mxu0
          %v402 = vadd.f32 0.0, %v401
          %v403 = vpop.f32.mrb[0].mxu0
          %v404 = vpop.f32.mrb[0].mxu0
          %v405 = vadd.f32 0.0, %v404
          %v406 = vpop.f32.mrb[0].mxu0
          %407 = vmatprep.mubr.bf16.mxu0 0
          %408 = vmatmul.mubr.bf16.gmra.mrb[0].mxu0 %v343
          %v409 = vpop.f32.mrb[0].mxu0
          %v410 = vadd.f32 0.0, %v409
          %v411 = vpop.f32.mrb[0].mxu0
          %v412 = vpop.f32.mrb[0].mxu0
          %v413 = vadd.f32 0.0, %v412
          %v414 = vpop.f32.mrb[0].mxu0
          %415 = vmatprep.mubr.bf16.mxu0 0
          %416 = vmatmul.mubr.bf16.gmra.mrb[0].mxu0 %v346
          %v417 = vpop.f32.mrb[0].mxu0
          %v418 = vadd.f32 0.0, %v417
          %v419 = vpop.f32.mrb[0].mxu0
          %v420 = vpop.f32.mrb[0].mxu0
          %v421 = vadd.f32 0.0, %v420
          %v422 = vpop.f32.mrb[0].mxu0
          %423 = vmatprep.mubr.bf16.mxu0 0
          %424 = vmatmul.mubr.bf16.gmra.mrb[0].mxu0 %v349
          %v425 = vpop.f32.mrb[0].mxu0
          %v426 = vadd.f32 0.0, %v425
          %v427 = vpop.f32.mrb[0].mxu0
          %v428 = vpop.f32.mrb[0].mxu0
          %v429 = vadd.f32 0.0, %v428
          %v430 = vpop.f32.mrb[0].mxu0
          %431 = vmatprep.mubr.bf16.mxu0 0
          %432 = vmatmul.mubr.bf16.gmra.mrb[0].mxu0 %v352
          %v433 = vpop.f32.mrb[0].mxu0
          %v434 = vadd.f32 0.0, %v433
          %v435 = vpop.f32.mrb[0].mxu0
          %v436 = vpop.f32.mrb[0].mxu0
          %v437 = vadd.f32 0.0, %v436
          %v438 = vpop.f32.mrb[0].mxu0
          %439 = vmatprep.mubr.bf16.mxu0 0
          %440 = vmatmul.mubr.bf16.gmra.mrb[0].mxu0 %v355
          %v441 = vpop.f32.mrb[0].mxu0
          %v442 = vadd.f32 0.0, %v441
          %v443 = vpop.f32.mrb[0].mxu0
          %v444 = vpop.f32.mrb[0].mxu0
          %v445 = vadd.f32 0.0, %v444
          %v446 = vpop.f32.mrb[0].mxu0
          %447 = vmatprep.mubr.bf16.mxu0 0
          %448 = vmatmul.mubr.bf16.gmra.mrb[0].mxu0 %v358
          %v449 = vpop.f32.mrb[0].mxu0
          %v450 = vadd.f32 0.0, %v449
          %v451 = vpop.f32.mrb[0].mxu0
          %v452 = vpop.f32.mrb[0].mxu0
          %v453 = vadd.f32 0.0, %v452
          %v454 = vpop.f32.mrb[0].mxu0
          %455 = vmatprep.mubr.bf16.mxu0 0
          %456 = vmatmul.mubr.bf16.gmra.mrb[0].mxu0 %v361
          %v457 = vpop.f32.mrb[0].mxu0
          %v458 = vadd.f32 0.0, %v457
          %v459 = vpop.f32.mrb[0].mxu0
          %v460 = vpop.f32.mrb[0].mxu0
          %v461 = vadd.f32 0.0, %v460
          %v462 = vpop.f32.mrb[0].mxu0
          %463 = vdwg.mxu0
          %v480 = vunpack.c.l.b16 %v240
          %v481 = vunpack.c.l.b16 %v241
          %v482 = vunpack.c.l.b16 %v242
          %v483 = vunpack.c.l.b16 %v243
          %v484 = vunpack.c.l.b16 %v244
          %v485 = vunpack.c.l.b16 %v245
          %v486 = vunpack.c.l.b16 %v246
          %v487 = vunpack.c.l.b16 %v247
          %v488 = vunpack.c.l.b16 %v248
          %v489 = vunpack.c.l.b16 %v249
          %v490 = vunpack.c.l.b16 %v250
          %v491 = vunpack.c.l.b16 %v251
          %v492 = vunpack.c.l.b16 %v252
          %v493 = vunpack.c.l.b16 %v253
          %v494 = vunpack.c.l.b16 %v254
          %v495 = vunpack.c.l.b16 %v255
          %v496 = vpack.c.b16 %v481, %v480
          %v497 = vpack.c.b16 %v483, %v482
          %v498 = vpack.c.b16 %v485, %v484
          %v499 = vpack.c.b16 %v487, %v486
          %v500 = vpack.c.b16 %v489, %v488
          %v501 = vpack.c.b16 %v491, %v490
          %v502 = vpack.c.b16 %v493, %v492
          %v503 = vpack.c.b16 %v495, %v494
          %v508 = vunpack.c.l.b16 %v256
          %v509 = vunpack.c.l.b16 %v257
          %v510 = vunpack.c.l.b16 %v258
          %v511 = vunpack.c.l.b16 %v259
          %v512 = vpack.c.b16 %v509, %v508
          %v513 = vpack.c.b16 %v511, %v510
          %v516 = vsel %vm338, %v496, 0
          %v519 = vsel %vm338, %v497, 0
          %v522 = vsel %vm338, %v498, 0
          %v525 = vsel %vm338, %v499, 0
          %v528 = vsel %vm338, %v500, 0
          %v531 = vsel %vm338, %v501, 0
          %v534 = vsel %vm338, %v502, 0
          %v537 = vsel %vm338, %v503, 0
          %v540 = vsel %vm363, %v513, 0
          %542 = vmatprep.subr.bf16.mxu0 0
          %543 = vmatpush1.bf16.msra.mxu0 %v512
          %544 = vmatprep.subr.bf16.mxu0 0
          %545 = vmatpush1.bf16.msra.mxu0 %v540
          %546 = vmatprep.subr.bf16.mxu0 0
          %547 = vmatpush1.bf16.msra.mxu0 0
          %548 = vmatprep.subr.bf16.mxu0 0
          %549 = vmatpush1.bf16.msra.mxu0 0
          %550 = vmatprep.subr.bf16.mxu0 0
          %551 = vmatpush1.bf16.msra.mxu0 0
          %552 = vmatprep.subr.bf16.mxu0 0
          %553 = vmatpush1.bf16.msra.mxu0 0
          %554 = vmatprep.subr.bf16.mxu0 0
          %555 = vmatpush1.bf16.msra.mxu0 0
          %556 = vmatprep.subr.bf16.mxu0 0
          %557 = vmatpush1.bf16.msra.mxu0 0
          %558 = vmatprep.subr.bf16.mxu0 0
          %559 = vmatpush1.bf16.msra.mxu0 0
          %560 = vmatprep.subr.bf16.mxu0 0
          %561 = vmatpush1.bf16.msra.mxu0 0
          %562 = vmatprep.subr.bf16.mxu0 0
          %563 = vmatpush1.bf16.msra.mxu0 0
          %564 = vmatprep.subr.bf16.mxu0 0
          %565 = vmatpush1.bf16.msra.mxu0 0
          %566 = vmatprep.subr.bf16.mxu0 0
          %567 = vmatpush1.bf16.msra.mxu0 0
          %568 = vmatprep.subr.bf16.mxu0 0
          %569 = vmatpush1.bf16.msra.mxu0 0
          %570 = vmatprep.subr.bf16.mxu0 0
          %571 = vmatpush1.bf16.msra.mxu0 0
          %572 = vmatprep.subr.bf16.mxu0 0
          %573 = vmatpush1.bf16.msra.mxu0 0
          %574 = vmatprep.mubr.bf16.mxu0 0
          %575 = vmatmul.mubr.bf16.gmra.mrb[0].mxu0 %v516
          %v576 = vpop.f32.mrb[0].mxu0
          %v577 = vadd.f32 %v402, %v576
          %v578 = vpop.f32.mrb[0].mxu0
          %v579 = vpop.f32.mrb[0].mxu0
          %v580 = vadd.f32 %v405, %v579
          %v581 = vpop.f32.mrb[0].mxu0
          %582 = vmatprep.mubr.bf16.mxu0 0
          %583 = vmatmul.mubr.bf16.gmra.mrb[0].mxu0 %v519
          %v584 = vpop.f32.mrb[0].mxu0
          %v585 = vadd.f32 %v410, %v584
          %v586 = vpop.f32.mrb[0].mxu0
          %v587 = vpop.f32.mrb[0].mxu0
          %v588 = vadd.f32 %v413, %v587
          %v589 = vpop.f32.mrb[0].mxu0
          %590 = vmatprep.mubr.bf16.mxu0 0
          %591 = vmatmul.mubr.bf16.gmra.mrb[0].mxu0 %v522
          %v592 = vpop.f32.mrb[0].mxu0
          %v593 = vadd.f32 %v418, %v592
          %v594 = vpop.f32.mrb[0].mxu0
          %v595 = vpop.f32.mrb[0].mxu0
          %v596 = vadd.f32 %v421, %v595
          %v597 = vpop.f32.mrb[0].mxu0
          %598 = vmatprep.mubr.bf16.mxu0 0
          %599 = vmatmul.mubr.bf16.gmra.mrb[0].mxu0 %v525
          %v600 = vpop.f32.mrb[0].mxu0
          %v601 = vadd.f32 %v426, %v600
          %v602 = vpop.f32.mrb[0].mxu0
          %v603 = vpop.f32.mrb[0].mxu0
          %v604 = vadd.f32 %v429, %v603
          %v605 = vpop.f32.mrb[0].mxu0
          %606 = vmatprep.mubr.bf16.mxu0 0
          %607 = vmatmul.mubr.bf16.gmra.mrb[0].mxu0 %v528
          %v608 = vpop.f32.mrb[0].mxu0
          %v609 = vadd.f32 %v434, %v608
          %v610 = vpop.f32.mrb[0].mxu0
          %v611 = vpop.f32.mrb[0].mxu0
          %v612 = vadd.f32 %v437, %v611
          %v613 = vpop.f32.mrb[0].mxu0
          %614 = vmatprep.mubr.bf16.mxu0 0
          %615 = vmatmul.mubr.bf16.gmra.mrb[0].mxu0 %v531
          %v616 = vpop.f32.mrb[0].mxu0
          %v617 = vadd.f32 %v442, %v616
          %v618 = vpop.f32.mrb[0].mxu0
          %v619 = vpop.f32.mrb[0].mxu0
          %v620 = vadd.f32 %v445, %v619
          %v621 = vpop.f32.mrb[0].mxu0
          %622 = vmatprep.mubr.bf16.mxu0 0
          %623 = vmatmul.mubr.bf16.gmra.mrb[0].mxu0 %v534
          %v624 = vpop.f32.mrb[0].mxu0
          %v625 = vadd.f32 %v450, %v624
          %v626 = vpop.f32.mrb[0].mxu0
          %v627 = vpop.f32.mrb[0].mxu0
          %v628 = vadd.f32 %v453, %v627
          %v629 = vpop.f32.mrb[0].mxu0
          %630 = vmatprep.mubr.bf16.mxu0 0
          %631 = vmatmul.mubr.bf16.gmra.mrb[0].mxu0 %v537
          %v632 = vpop.f32.mrb[0].mxu0
          %v633 = vadd.f32 %v458, %v632
          %v634 = vpop.f32.mrb[0].mxu0
          %v635 = vpop.f32.mrb[0].mxu0
          %v636 = vadd.f32 %v461, %v635
          %v637 = vpop.f32.mrb[0].mxu0
          %638 = vdwg.mxu0
          %s639 = sadd.s32 %s234, 2
          %s640 = smul.u32 %s639, 16
          %s641 = sshra.s32 %s640, 3
          %s642 = sand.u32 %s640, 7
          %s643 = smul.addr %s641, 4
          %s644 = scalar_lea.vmem %s215, %s643
          %v645 = vld [vmem:[%s644] sm:$0xf]
          %v646 = vld [vmem:[%s644 + $0x4] sm:$0xf]
          %v647 = vld [vmem:[%s644 + $0x8] sm:$0xf]
          %v648 = vld [vmem:[%s644 + $0xc] sm:$0xf]
          %v649 = vld [vmem:[%s644 + $0x10] sm:$0xf]
          %v650 = vld [vmem:[%s644 + $0x14] sm:$0xf]
          %v651 = vld [vmem:[%s644 + $0x18] sm:$0xf]
          %v652 = vld [vmem:[%s644 + $0x1c] sm:$0xf]
          %v653 = vld [vmem:[%s644 + $0x20] sm:$0xf]
          %v654 = vld [vmem:[%s644 + $0x24] sm:$0xf]
          %v655 = vld [vmem:[%s644 + $0x28] sm:$0xf]
          %v656 = vld [vmem:[%s644 + $0x2c] sm:$0xf]
          %v657 = vld [vmem:[%s644 + $0x30] sm:$0xf]
          %v658 = vld [vmem:[%s644 + $0x34] sm:$0xf]
          %v659 = vld [vmem:[%s644 + $0x38] sm:$0xf]
          %v660 = vld [vmem:[%s644 + $0x3c] sm:$0xf]
          %s661 = scalar_lea.vmem %s219, 32
          %v662 = vld [vmem:[%s661] sm:$0xf]
          %v663 = vld [vmem:[%s661 + $0x4] sm:$0xf]
          %v664 = vld [vmem:[%s661 + $0x8] sm:$0xf]
          %v665 = vld [vmem:[%s661 + $0xc] sm:$0x3]
          %v682 = vunpack.c.l.b16 %v645
          %v683 = vunpack.c.l.b16 %v646
          %v684 = vunpack.c.l.b16 %v647
          %v685 = vunpack.c.l.b16 %v648
          %v686 = vunpack.c.l.b16 %v649
          %v687 = vunpack.c.l.b16 %v650
          %v688 = vunpack.c.l.b16 %v651
          %v689 = vunpack.c.l.b16 %v652
          %v690 = vunpack.c.l.b16 %v653
          %v691 = vunpack.c.l.b16 %v654
          %v692 = vunpack.c.l.b16 %v655
          %v693 = vunpack.c.l.b16 %v656
          %v694 = vunpack.c.l.b16 %v657
          %v695 = vunpack.c.l.b16 %v658
          %v696 = vunpack.c.l.b16 %v659
          %v697 = vunpack.c.l.b16 %v660
          %v698 = vpack.c.b16 %v683, %v682
          %v699 = vpack.c.b16 %v685, %v684
          %v700 = vpack.c.b16 %v687, %v686
          %v701 = vpack.c.b16 %v689, %v688
          %v702 = vpack.c.b16 %v691, %v690
          %v703 = vpack.c.b16 %v693, %v692
          %v704 = vpack.c.b16 %v695, %v694
          %v705 = vpack.c.b16 %v697, %v696
          %v710 = vunpack.c.l.b16 %v662
          %v711 = vunpack.c.l.b16 %v663
          %v712 = vunpack.c.l.b16 %v664
          %v713 = vunpack.c.l.b16 %v665
          %v714 = vpack.c.b16 %v711, %v710
          %v715 = vpack.c.b16 %v713, %v712
          %v718 = vsel %vm338, %v698, 0
          %v721 = vsel %vm338, %v699, 0
          %v724 = vsel %vm338, %v700, 0
          %v727 = vsel %vm338, %v701, 0
          %v730 = vsel %vm338, %v702, 0
          %v733 = vsel %vm338, %v703, 0
          %v736 = vsel %vm338, %v704, 0
          %v739 = vsel %vm338, %v705, 0
          %v742 = vsel %vm363, %v715, 0
          %744 = vmatprep.subr.bf16.mxu0 0
          %745 = vmatpush1.bf16.msra.mxu0 %v714
          %746 = vmatprep.subr.bf16.mxu0 0
          %747 = vmatpush1.bf16.msra.mxu0 %v742
          %748 = vmatprep.subr.bf16.mxu0 0
          %749 = vmatpush1.bf16.msra.mxu0 0
          %750 = vmatprep.subr.bf16.mxu0 0
          %751 = vmatpush1.bf16.msra.mxu0 0
          %752 = vmatprep.subr.bf16.mxu0 0
          %753 = vmatpush1.bf16.msra.mxu0 0
          %754 = vmatprep.subr.bf16.mxu0 0
          %755 = vmatpush1.bf16.msra.mxu0 0
          %756 = vmatprep.subr.bf16.mxu0 0
          %757 = vmatpush1.bf16.msra.mxu0 0
          %758 = vmatprep.subr.bf16.mxu0 0
          %759 = vmatpush1.bf16.msra.mxu0 0
          %760 = vmatprep.subr.bf16.mxu0 0
          %761 = vmatpush1.bf16.msra.mxu0 0
          %762 = vmatprep.subr.bf16.mxu0 0
          %763 = vmatpush1.bf16.msra.mxu0 0
          %764 = vmatprep.subr.bf16.mxu0 0
          %765 = vmatpush1.bf16.msra.mxu0 0
          %766 = vmatprep.subr.bf16.mxu0 0
          %767 = vmatpush1.bf16.msra.mxu0 0
          %768 = vmatprep.subr.bf16.mxu0 0
          %769 = vmatpush1.bf16.msra.mxu0 0
          %770 = vmatprep.subr.bf16.mxu0 0
          %771 = vmatpush1.bf16.msra.mxu0 0
          %772 = vmatprep.subr.bf16.mxu0 0
          %773 = vmatpush1.bf16.msra.mxu0 0
          %774 = vmatprep.subr.bf16.mxu0 0
          %775 = vmatpush1.bf16.msra.mxu0 0
          %776 = vmatprep.mubr.bf16.mxu0 0
          %777 = vmatmul.mubr.bf16.gmra.mrb[0].mxu0 %v718
          %v778 = vpop.f32.mrb[0].mxu0
          %v779 = vadd.f32 0.0, %v778
          %v780 = vpop.f32.mrb[0].mxu0
          %v781 = vpop.f32.mrb[0].mxu0
          %v782 = vadd.f32 0.0, %v781
          %v783 = vpop.f32.mrb[0].mxu0
          %784 = vmatprep.mubr.bf16.mxu0 0
          %785 = vmatmul.mubr.bf16.gmra.mrb[0].mxu0 %v721
          %v786 = vpop.f32.mrb[0].mxu0
          %v787 = vadd.f32 0.0, %v786
          %v788 = vpop.f32.mrb[0].mxu0
          %v789 = vpop.f32.mrb[0].mxu0
          %v790 = vadd.f32 0.0, %v789
          %v791 = vpop.f32.mrb[0].mxu0
          %792 = vmatprep.mubr.bf16.mxu0 0
          %793 = vmatmul.mubr.bf16.gmra.mrb[0].mxu0 %v724
          %v794 = vpop.f32.mrb[0].mxu0
          %v795 = vadd.f32 0.0, %v794
          %v796 = vpop.f32.mrb[0].mxu0
          %v797 = vpop.f32.mrb[0].mxu0
          %v798 = vadd.f32 0.0, %v797
          %v799 = vpop.f32.mrb[0].mxu0
          %800 = vmatprep.mubr.bf16.mxu0 0
          %801 = vmatmul.mubr.bf16.gmra.mrb[0].mxu0 %v727
          %v802 = vpop.f32.mrb[0].mxu0
          %v803 = vadd.f32 0.0, %v802
          %v804 = vpop.f32.mrb[0].mxu0
          %v805 = vpop.f32.mrb[0].mxu0
          %v806 = vadd.f32 0.0, %v805
          %v807 = vpop.f32.mrb[0].mxu0
          %808 = vmatprep.mubr.bf16.mxu0 0
          %809 = vmatmul.mubr.bf16.gmra.mrb[0].mxu0 %v730
          %v810 = vpop.f32.mrb[0].mxu0
          %v811 = vadd.f32 0.0, %v810
          %v812 = vpop.f32.mrb[0].mxu0
          %v813 = vpop.f32.mrb[0].mxu0
          %v814 = vadd.f32 0.0, %v813
          %v815 = vpop.f32.mrb[0].mxu0
          %816 = vmatprep.mubr.bf16.mxu0 0
          %817 = vmatmul.mubr.bf16.gmra.mrb[0].mxu0 %v733
          %v818 = vpop.f32.mrb[0].mxu0
          %v819 = vadd.f32 0.0, %v818
          %v820 = vpop.f32.mrb[0].mxu0
          %v821 = vpop.f32.mrb[0].mxu0
          %v822 = vadd.f32 0.0, %v821
          %v823 = vpop.f32.mrb[0].mxu0
          %824 = vmatprep.mubr.bf16.mxu0 0
          %825 = vmatmul.mubr.bf16.gmra.mrb[0].mxu0 %v736
          %v826 = vpop.f32.mrb[0].mxu0
          %v827 = vadd.f32 0.0, %v826
          %v828 = vpop.f32.mrb[0].mxu0
          %v829 = vpop.f32.mrb[0].mxu0
          %v830 = vadd.f32 0.0, %v829
          %v831 = vpop.f32.mrb[0].mxu0
          %832 = vmatprep.mubr.bf16.mxu0 0
          %833 = vmatmul.mubr.bf16.gmra.mrb[0].mxu0 %v739
          %v834 = vpop.f32.mrb[0].mxu0
          %v835 = vadd.f32 0.0, %v834
          %v836 = vpop.f32.mrb[0].mxu0
          %v837 = vpop.f32.mrb[0].mxu0
          %v838 = vadd.f32 0.0, %v837
          %v839 = vpop.f32.mrb[0].mxu0
          %840 = vdwg.mxu0
          %v841 = vadd.f32 %v577, %v779
          %v842 = vadd.f32 %v580, %v782
          %v843 = vadd.f32 %v585, %v787
          %v844 = vadd.f32 %v588, %v790
          %v845 = vadd.f32 %v593, %v795
          %v846 = vadd.f32 %v596, %v798
          %v847 = vadd.f32 %v601, %v803
          %v848 = vadd.f32 %v604, %v806
          %v849 = vadd.f32 %v609, %v811
          %v850 = vadd.f32 %v612, %v814
          %v851 = vadd.f32 %v617, %v819
          %v852 = vadd.f32 %v620, %v822
          %v853 = vadd.f32 %v625, %v827
          %v854 = vadd.f32 %v628, %v830
          %v855 = vadd.f32 %v633, %v835
          %v856 = vadd.f32 %v636, %v838
          %s857 = sadd.s32 %s234, 3
          %s858 = smul.u32 %s857, 16
          %s859 = sshra.s32 %s858, 3
          %s860 = sand.u32 %s858, 7
          %s861 = smul.addr %s859, 4
          %s862 = scalar_lea.vmem %s215, %s861
          %v863 = vld [vmem:[%s862] sm:$0xf]
          %v864 = vld [vmem:[%s862 + $0x4] sm:$0xf]
          %v865 = vld [vmem:[%s862 + $0x8] sm:$0xf]
          %v866 = vld [vmem:[%s862 + $0xc] sm:$0xf]
          %v867 = vld [vmem:[%s862 + $0x10] sm:$0xf]
          %v868 = vld [vmem:[%s862 + $0x14] sm:$0xf]
          %v869 = vld [vmem:[%s862 + $0x18] sm:$0xf]
          %v870 = vld [vmem:[%s862 + $0x1c] sm:$0xf]
          %v871 = vld [vmem:[%s862 + $0x20] sm:$0xf]
          %v872 = vld [vmem:[%s862 + $0x24] sm:$0xf]
          %v873 = vld [vmem:[%s862 + $0x28] sm:$0xf]
          %v874 = vld [vmem:[%s862 + $0x2c] sm:$0xf]
          %v875 = vld [vmem:[%s862 + $0x30] sm:$0xf]
          %v876 = vld [vmem:[%s862 + $0x34] sm:$0xf]
          %v877 = vld [vmem:[%s862 + $0x38] sm:$0xf]
          %v878 = vld [vmem:[%s862 + $0x3c] sm:$0xf]
          %s879 = scalar_lea.vmem %s219, 48
          %v880 = vld [vmem:[%s879] sm:$0xf]
          %v881 = vld [vmem:[%s879 + $0x4] sm:$0xf]
          %v882 = vld [vmem:[%s879 + $0x8] sm:$0xf]
          %v883 = vld [vmem:[%s879 + $0xc] sm:$0x3]
          %v900 = vunpack.c.l.b16 %v863
          %v901 = vunpack.c.l.b16 %v864
          %v902 = vunpack.c.l.b16 %v865
          %v903 = vunpack.c.l.b16 %v866
          %v904 = vunpack.c.l.b16 %v867
          %v905 = vunpack.c.l.b16 %v868
          %v906 = vunpack.c.l.b16 %v869
          %v907 = vunpack.c.l.b16 %v870
          %v908 = vunpack.c.l.b16 %v871
          %v909 = vunpack.c.l.b16 %v872
          %v910 = vunpack.c.l.b16 %v873
          %v911 = vunpack.c.l.b16 %v874
          %v912 = vunpack.c.l.b16 %v875
          %v913 = vunpack.c.l.b16 %v876
          %v914 = vunpack.c.l.b16 %v877
          %v915 = vunpack.c.l.b16 %v878
          %v916 = vpack.c.b16 %v901, %v900
          %v917 = vpack.c.b16 %v903, %v902
          %v918 = vpack.c.b16 %v905, %v904
          %v919 = vpack.c.b16 %v907, %v906
          %v920 = vpack.c.b16 %v909, %v908
          %v921 = vpack.c.b16 %v911, %v910
          %v922 = vpack.c.b16 %v913, %v912
          %v923 = vpack.c.b16 %v915, %v914
          %v928 = vunpack.c.l.b16 %v880
          %v929 = vunpack.c.l.b16 %v881
          %v930 = vunpack.c.l.b16 %v882
          %v931 = vunpack.c.l.b16 %v883
          %v932 = vpack.c.b16 %v929, %v928
          %v933 = vpack.c.b16 %v931, %v930
          %v936 = vsel %vm338, %v916, 0
          %v939 = vsel %vm338, %v917, 0
          %v942 = vsel %vm338, %v918, 0
          %v945 = vsel %vm338, %v919, 0
          %v948 = vsel %vm338, %v920, 0
          %v951 = vsel %vm338, %v921, 0
          %v954 = vsel %vm338, %v922, 0
          %v957 = vsel %vm338, %v923, 0
          %v960 = vsel %vm363, %v933, 0
          %962 = vmatprep.subr.bf16.mxu0 0
          %963 = vmatpush1.bf16.msra.mxu0 %v932
          %964 = vmatprep.subr.bf16.mxu0 0
          %965 = vmatpush1.bf16.msra.mxu0 %v960
          %966 = vmatprep.subr.bf16.mxu0 0
          %967 = vmatpush1.bf16.msra.mxu0 0
          %968 = vmatprep.subr.bf16.mxu0 0
          %969 = vmatpush1.bf16.msra.mxu0 0
          %970 = vmatprep.subr.bf16.mxu0 0
          %971 = vmatpush1.bf16.msra.mxu0 0
          %972 = vmatprep.subr.bf16.mxu0 0
          %973 = vmatpush1.bf16.msra.mxu0 0
          %974 = vmatprep.subr.bf16.mxu0 0
          %975 = vmatpush1.bf16.msra.mxu0 0
          %976 = vmatprep.subr.bf16.mxu0 0
          %977 = vmatpush1.bf16.msra.mxu0 0
          %978 = vmatprep.subr.bf16.mxu0 0
          %979 = vmatpush1.bf16.msra.mxu0 0
          %980 = vmatprep.subr.bf16.mxu0 0
          %981 = vmatpush1.bf16.msra.mxu0 0
          %982 = vmatprep.subr.bf16.mxu0 0
          %983 = vmatpush1.bf16.msra.mxu0 0
          %984 = vmatprep.subr.bf16.mxu0 0
          %985 = vmatpush1.bf16.msra.mxu0 0
          %986 = vmatprep.subr.bf16.mxu0 0
          %987 = vmatpush1.bf16.msra.mxu0 0
          %988 = vmatprep.subr.bf16.mxu0 0
          %989 = vmatpush1.bf16.msra.mxu0 0
          %990 = vmatprep.subr.bf16.mxu0 0
          %991 = vmatpush1.bf16.msra.mxu0 0
          %992 = vmatprep.subr.bf16.mxu0 0
          %993 = vmatpush1.bf16.msra.mxu0 0
          %994 = vmatprep.mubr.bf16.mxu0 0
          %995 = vmatmul.mubr.bf16.gmra.mrb[0].mxu0 %v936
          %v996 = vpop.f32.mrb[0].mxu0
          %v997 = vadd.f32 0.0, %v996
          %v998 = vpop.f32.mrb[0].mxu0
          %v999 = vpop.f32.mrb[0].mxu0
          %v1000 = vadd.f32 0.0, %v999
          %v1001 = vpop.f32.mrb[0].mxu0
          %1002 = vmatprep.mubr.bf16.mxu0 0
          %1003 = vmatmul.mubr.bf16.gmra.mrb[0].mxu0 %v939
          %v1004 = vpop.f32.mrb[0].mxu0
          %v1005 = vadd.f32 0.0, %v1004
          %v1006 = vpop.f32.mrb[0].mxu0
          %v1007 = vpop.f32.mrb[0].mxu0
          %v1008 = vadd.f32 0.0, %v1007
          %v1009 = vpop.f32.mrb[0].mxu0
          %1010 = vmatprep.mubr.bf16.mxu0 0
          %1011 = vmatmul.mubr.bf16.gmra.mrb[0].mxu0 %v942
          %v1012 = vpop.f32.mrb[0].mxu0
          %v1013 = vadd.f32 0.0, %v1012
          %v1014 = vpop.f32.mrb[0].mxu0
          %v1015 = vpop.f32.mrb[0].mxu0
          %v1016 = vadd.f32 0.0, %v1015
          %v1017 = vpop.f32.mrb[0].mxu0
          %1018 = vmatprep.mubr.bf16.mxu0 0
          %1019 = vmatmul.mubr.bf16.gmra.mrb[0].mxu0 %v945
          %v1020 = vpop.f32.mrb[0].mxu0
          %v1021 = vadd.f32 0.0, %v1020
          %v1022 = vpop.f32.mrb[0].mxu0
          %v1023 = vpop.f32.mrb[0].mxu0
          %v1024 = vadd.f32 0.0, %v1023
          %v1025 = vpop.f32.mrb[0].mxu0
          %1026 = vmatprep.mubr.bf16.mxu0 0
          %1027 = vmatmul.mubr.bf16.gmra.mrb[0].mxu0 %v948
          %v1028 = vpop.f32.mrb[0].mxu0
          %v1029 = vadd.f32 0.0, %v1028
          %v1030 = vpop.f32.mrb[0].mxu0
          %v1031 = vpop.f32.mrb[0].mxu0
          %v1032 = vadd.f32 0.0, %v1031
          %v1033 = vpop.f32.mrb[0].mxu0
          %1034 = vmatprep.mubr.bf16.mxu0 0
          %1035 = vmatmul.mubr.bf16.gmra.mrb[0].mxu0 %v951
          %v1036 = vpop.f32.mrb[0].mxu0
          %v1037 = vadd.f32 0.0, %v1036
          %v1038 = vpop.f32.mrb[0].mxu0
          %v1039 = vpop.f32.mrb[0].mxu0
          %v1040 = vadd.f32 0.0, %v1039
          %v1041 = vpop.f32.mrb[0].mxu0
          %1042 = vmatprep.mubr.bf16.mxu0 0
          %1043 = vmatmul.mubr.bf16.gmra.mrb[0].mxu0 %v954
          %v1044 = vpop.f32.mrb[0].mxu0
          %v1045 = vadd.f32 0.0, %v1044
          %v1046 = vpop.f32.mrb[0].mxu0
          %v1047 = vpop.f32.mrb[0].mxu0
          %v1048 = vadd.f32 0.0, %v1047
          %v1049 = vpop.f32.mrb[0].mxu0
          %1050 = vmatprep.mubr.bf16.mxu0 0
          %1051 = vmatmul.mubr.bf16.gmra.mrb[0].mxu0 %v957
          %v1052 = vpop.f32.mrb[0].mxu0
          %v1053 = vadd.f32 0.0, %v1052
          %v1054 = vpop.f32.mrb[0].mxu0
          %v1055 = vpop.f32.mrb[0].mxu0
          %v1056 = vadd.f32 0.0, %v1055
          %v1057 = vpop.f32.mrb[0].mxu0
          %1058 = vdwg.mxu0
          %v1059 = vadd.f32 %v841, %v997
          %v1060 = vadd.f32 %v842, %v1000
          %v1061 = vadd.f32 %v843, %v1005
          %v1062 = vadd.f32 %v844, %v1008
          %v1063 = vadd.f32 %v845, %v1013
          %v1064 = vadd.f32 %v846, %v1016
          %v1065 = vadd.f32 %v847, %v1021
          %v1066 = vadd.f32 %v848, %v1024
          %v1067 = vadd.f32 %v849, %v1029
          %v1068 = vadd.f32 %v850, %v1032
          %v1069 = vadd.f32 %v851, %v1037
          %v1070 = vadd.f32 %v852, %v1040
          %v1071 = vadd.f32 %v853, %v1045
          %v1072 = vadd.f32 %v854, %v1048
          %v1073 = vadd.f32 %v855, %v1053
          %v1074 = vadd.f32 %v856, %v1056
          %s1075 = sadd.s32 %s234, 4
          %s1076 = smul.u32 %s1075, 16
          %s1077 = sshra.s32 %s1076, 3
          %s1078 = sand.u32 %s1076, 7
          %s1079 = smul.addr %s1077, 4
          %s1080 = scalar_lea.vmem %s215, %s1079
          %v1081 = vld [vmem:[%s1080] sm:$0xf]
          %v1082 = vld [vmem:[%s1080 + $0x4] sm:$0xf]
          %v1083 = vld [vmem:[%s1080 + $0x8] sm:$0xf]
          %v1084 = vld [vmem:[%s1080 + $0xc] sm:$0xf]
          %v1085 = vld [vmem:[%s1080 + $0x10] sm:$0xf]
          %v1086 = vld [vmem:[%s1080 + $0x14] sm:$0xf]
          %v1087 = vld [vmem:[%s1080 + $0x18] sm:$0xf]
          %v1088 = vld [vmem:[%s1080 + $0x1c] sm:$0xf]
          %v1089 = vld [vmem:[%s1080 + $0x20] sm:$0xf]
          %v1090 = vld [vmem:[%s1080 + $0x24] sm:$0xf]
          %v1091 = vld [vmem:[%s1080 + $0x28] sm:$0xf]
          %v1092 = vld [vmem:[%s1080 + $0x2c] sm:$0xf]
          %v1093 = vld [vmem:[%s1080 + $0x30] sm:$0xf]
          %v1094 = vld [vmem:[%s1080 + $0x34] sm:$0xf]
          %v1095 = vld [vmem:[%s1080 + $0x38] sm:$0xf]
          %v1096 = vld [vmem:[%s1080 + $0x3c] sm:$0xf]
          %s1097 = scalar_lea.vmem %s219, 64
          %v1098 = vld [vmem:[%s1097] sm:$0xf]
          %v1099 = vld [vmem:[%s1097 + $0x4] sm:$0xf]
          %v1100 = vld [vmem:[%s1097 + $0x8] sm:$0xf]
          %v1101 = vld [vmem:[%s1097 + $0xc] sm:$0x3]
          %v1118 = vunpack.c.l.b16 %v1081
          %v1119 = vunpack.c.l.b16 %v1082
          %v1120 = vunpack.c.l.b16 %v1083
          %v1121 = vunpack.c.l.b16 %v1084
          %v1122 = vunpack.c.l.b16 %v1085
          %v1123 = vunpack.c.l.b16 %v1086
          %v1124 = vunpack.c.l.b16 %v1087
          %v1125 = vunpack.c.l.b16 %v1088
          %v1126 = vunpack.c.l.b16 %v1089
          %v1127 = vunpack.c.l.b16 %v1090
          %v1128 = vunpack.c.l.b16 %v1091
          %v1129 = vunpack.c.l.b16 %v1092
          %v1130 = vunpack.c.l.b16 %v1093
          %v1131 = vunpack.c.l.b16 %v1094
          %v1132 = vunpack.c.l.b16 %v1095
          %v1133 = vunpack.c.l.b16 %v1096
          %v1134 = vpack.c.b16 %v1119, %v1118
          %v1135 = vpack.c.b16 %v1121, %v1120
          %v1136 = vpack.c.b16 %v1123, %v1122
          %v1137 = vpack.c.b16 %v1125, %v1124
          %v1138 = vpack.c.b16 %v1127, %v1126
          %v1139 = vpack.c.b16 %v1129, %v1128
          %v1140 = vpack.c.b16 %v1131, %v1130
          %v1141 = vpack.c.b16 %v1133, %v1132
          %v1146 = vunpack.c.l.b16 %v1098
          %v1147 = vunpack.c.l.b16 %v1099
          %v1148 = vunpack.c.l.b16 %v1100
          %v1149 = vunpack.c.l.b16 %v1101
          %v1150 = vpack.c.b16 %v1147, %v1146
          %v1151 = vpack.c.b16 %v1149, %v1148
          %v1154 = vsel %vm338, %v1134, 0
          %v1157 = vsel %vm338, %v1135, 0
          %v1160 = vsel %vm338, %v1136, 0
          %v1163 = vsel %vm338, %v1137, 0
          %v1166 = vsel %vm338, %v1138, 0
          %v1169 = vsel %vm338, %v1139, 0
          %v1172 = vsel %vm338, %v1140, 0
          %v1175 = vsel %vm338, %v1141, 0
          %v1178 = vsel %vm363, %v1151, 0
          %1180 = vmatprep.subr.bf16.mxu0 0
          %1181 = vmatpush1.bf16.msra.mxu0 %v1150
          %1182 = vmatprep.subr.bf16.mxu0 0
          %1183 = vmatpush1.bf16.msra.mxu0 %v1178
          %1184 = vmatprep.subr.bf16.mxu0 0
          %1185 = vmatpush1.bf16.msra.mxu0 0
          %1186 = vmatprep.subr.bf16.mxu0 0
          %1187 = vmatpush1.bf16.msra.mxu0 0
          %1188 = vmatprep.subr.bf16.mxu0 0
          %1189 = vmatpush1.bf16.msra.mxu0 0
          %1190 = vmatprep.subr.bf16.mxu0 0
          %1191 = vmatpush1.bf16.msra.mxu0 0
          %1192 = vmatprep.subr.bf16.mxu0 0
          %1193 = vmatpush1.bf16.msra.mxu0 0
          %1194 = vmatprep.subr.bf16.mxu0 0
          %1195 = vmatpush1.bf16.msra.mxu0 0
          %1196 = vmatprep.subr.bf16.mxu0 0
          %1197 = vmatpush1.bf16.msra.mxu0 0
          %1198 = vmatprep.subr.bf16.mxu0 0
          %1199 = vmatpush1.bf16.msra.mxu0 0
          %1200 = vmatprep.subr.bf16.mxu0 0
          %1201 = vmatpush1.bf16.msra.mxu0 0
          %1202 = vmatprep.subr.bf16.mxu0 0
          %1203 = vmatpush1.bf16.msra.mxu0 0
          %1204 = vmatprep.subr.bf16.mxu0 0
          %1205 = vmatpush1.bf16.msra.mxu0 0
          %1206 = vmatprep.subr.bf16.mxu0 0
          %1207 = vmatpush1.bf16.msra.mxu0 0
          %1208 = vmatprep.subr.bf16.mxu0 0
          %1209 = vmatpush1.bf16.msra.mxu0 0
          %1210 = vmatprep.subr.bf16.mxu0 0
          %1211 = vmatpush1.bf16.msra.mxu0 0
          %1212 = vmatprep.mubr.bf16.mxu0 0
          %1213 = vmatmul.mubr.bf16.gmra.mrb[0].mxu0 %v1154
          %v1214 = vpop.f32.mrb[0].mxu0
          %v1215 = vadd.f32 0.0, %v1214
          %v1216 = vpop.f32.mrb[0].mxu0
          %v1217 = vpop.f32.mrb[0].mxu0
          %v1218 = vadd.f32 0.0, %v1217
          %v1219 = vpop.f32.mrb[0].mxu0
          %1220 = vmatprep.mubr.bf16.mxu0 0
          %1221 = vmatmul.mubr.bf16.gmra.mrb[0].mxu0 %v1157
          %v1222 = vpop.f32.mrb[0].mxu0
          %v1223 = vadd.f32 0.0, %v1222
          %v1224 = vpop.f32.mrb[0].mxu0
          %v1225 = vpop.f32.mrb[0].mxu0
          %v1226 = vadd.f32 0.0, %v1225
          %v1227 = vpop.f32.mrb[0].mxu0
          %1228 = vmatprep.mubr.bf16.mxu0 0
          %1229 = vmatmul.mubr.bf16.gmra.mrb[0].mxu0 %v1160
          %v1230 = vpop.f32.mrb[0].mxu0
          %v1231 = vadd.f32 0.0, %v1230
          %v1232 = vpop.f32.mrb[0].mxu0
          %v1233 = vpop.f32.mrb[0].mxu0
          %v1234 = vadd.f32 0.0, %v1233
          %v1235 = vpop.f32.mrb[0].mxu0
          %1236 = vmatprep.mubr.bf16.mxu0 0
          %1237 = vmatmul.mubr.bf16.gmra.mrb[0].mxu0 %v1163
          %v1238 = vpop.f32.mrb[0].mxu0
          %v1239 = vadd.f32 0.0, %v1238
          %v1240 = vpop.f32.mrb[0].mxu0
          %v1241 = vpop.f32.mrb[0].mxu0
          %v1242 = vadd.f32 0.0, %v1241
          %v1243 = vpop.f32.mrb[0].mxu0
          %1244 = vmatprep.mubr.bf16.mxu0 0
          %1245 = vmatmul.mubr.bf16.gmra.mrb[0].mxu0 %v1166
          %v1246 = vpop.f32.mrb[0].mxu0
          %v1247 = vadd.f32 0.0, %v1246
          %v1248 = vpop.f32.mrb[0].mxu0
          %v1249 = vpop.f32.mrb[0].mxu0
          %v1250 = vadd.f32 0.0, %v1249
          %v1251 = vpop.f32.mrb[0].mxu0
          %1252 = vmatprep.mubr.bf16.mxu0 0
          %1253 = vmatmul.mubr.bf16.gmra.mrb[0].mxu0 %v1169
          %v1254 = vpop.f32.mrb[0].mxu0
          %v1255 = vadd.f32 0.0, %v1254
          %v1256 = vpop.f32.mrb[0].mxu0
          %v1257 = vpop.f32.mrb[0].mxu0
          %v1258 = vadd.f32 0.0, %v1257
          %v1259 = vpop.f32.mrb[0].mxu0
          %1260 = vmatprep.mubr.bf16.mxu0 0
          %1261 = vmatmul.mubr.bf16.gmra.mrb[0].mxu0 %v1172
          %v1262 = vpop.f32.mrb[0].mxu0
          %v1263 = vadd.f32 0.0, %v1262
          %v1264 = vpop.f32.mrb[0].mxu0
          %v1265 = vpop.f32.mrb[0].mxu0
          %v1266 = vadd.f32 0.0, %v1265
          %v1267 = vpop.f32.mrb[0].mxu0
          %1268 = vmatprep.mubr.bf16.mxu0 0
          %1269 = vmatmul.mubr.bf16.gmra.mrb[0].mxu0 %v1175
          %v1270 = vpop.f32.mrb[0].mxu0
          %v1271 = vadd.f32 0.0, %v1270
          %v1272 = vpop.f32.mrb[0].mxu0
          %v1273 = vpop.f32.mrb[0].mxu0
          %v1274 = vadd.f32 0.0, %v1273
          %v1275 = vpop.f32.mrb[0].mxu0
          %1276 = vdwg.mxu0
          %v1277 = vadd.f32 %v1059, %v1215
          %v1278 = vadd.f32 %v1060, %v1218
          %v1279 = vadd.f32 %v1061, %v1223
          %v1280 = vadd.f32 %v1062, %v1226
          %v1281 = vadd.f32 %v1063, %v1231
          %v1282 = vadd.f32 %v1064, %v1234
          %v1283 = vadd.f32 %v1065, %v1239
          %v1284 = vadd.f32 %v1066, %v1242
          %v1285 = vadd.f32 %v1067, %v1247
          %v1286 = vadd.f32 %v1068, %v1250
          %v1287 = vadd.f32 %v1069, %v1255
          %v1288 = vadd.f32 %v1070, %v1258
          %v1289 = vadd.f32 %v1071, %v1263
          %v1290 = vadd.f32 %v1072, %v1266
          %v1291 = vadd.f32 %v1073, %v1271
          %v1292 = vadd.f32 %v1074, %v1274
          %s1293 = sadd.s32 %s234, 5
          %s1294 = smul.u32 %s1293, 16
          %s1295 = sshra.s32 %s1294, 3
          %s1296 = sand.u32 %s1294, 7
          %s1297 = smul.addr %s1295, 4
          %s1298 = scalar_lea.vmem %s215, %s1297
          %v1299 = vld [vmem:[%s1298] sm:$0xf]
          %v1300 = vld [vmem:[%s1298 + $0x4] sm:$0xf]
          %v1301 = vld [vmem:[%s1298 + $0x8] sm:$0xf]
          %v1302 = vld [vmem:[%s1298 + $0xc] sm:$0xf]
          %v1303 = vld [vmem:[%s1298 + $0x10] sm:$0xf]
          %v1304 = vld [vmem:[%s1298 + $0x14] sm:$0xf]
          %v1305 = vld [vmem:[%s1298 + $0x18] sm:$0xf]
          %v1306 = vld [vmem:[%s1298 + $0x1c] sm:$0xf]
          %v1307 = vld [vmem:[%s1298 + $0x20] sm:$0xf]
          %v1308 = vld [vmem:[%s1298 + $0x24] sm:$0xf]
          %v1309 = vld [vmem:[%s1298 + $0x28] sm:$0xf]
          %v1310 = vld [vmem:[%s1298 + $0x2c] sm:$0xf]
          %v1311 = vld [vmem:[%s1298 + $0x30] sm:$0xf]
          %v1312 = vld [vmem:[%s1298 + $0x34] sm:$0xf]
          %v1313 = vld [vmem:[%s1298 + $0x38] sm:$0xf]
          %v1314 = vld [vmem:[%s1298 + $0x3c] sm:$0xf]
          %s1315 = scalar_lea.vmem %s219, 80
          %v1316 = vld [vmem:[%s1315] sm:$0xf]
          %v1317 = vld [vmem:[%s1315 + $0x4] sm:$0xf]
          %v1318 = vld [vmem:[%s1315 + $0x8] sm:$0xf]
          %v1319 = vld [vmem:[%s1315 + $0xc] sm:$0x3]
          %v1336 = vunpack.c.l.b16 %v1299
          %v1337 = vunpack.c.l.b16 %v1300
          %v1338 = vunpack.c.l.b16 %v1301
          %v1339 = vunpack.c.l.b16 %v1302
          %v1340 = vunpack.c.l.b16 %v1303
          %v1341 = vunpack.c.l.b16 %v1304
          %v1342 = vunpack.c.l.b16 %v1305
          %v1343 = vunpack.c.l.b16 %v1306
          %v1344 = vunpack.c.l.b16 %v1307
          %v1345 = vunpack.c.l.b16 %v1308
          %v1346 = vunpack.c.l.b16 %v1309
          %v1347 = vunpack.c.l.b16 %v1310
          %v1348 = vunpack.c.l.b16 %v1311
          %v1349 = vunpack.c.l.b16 %v1312
          %v1350 = vunpack.c.l.b16 %v1313
          %v1351 = vunpack.c.l.b16 %v1314
          %v1352 = vpack.c.b16 %v1337, %v1336
          %v1353 = vpack.c.b16 %v1339, %v1338
          %v1354 = vpack.c.b16 %v1341, %v1340
          %v1355 = vpack.c.b16 %v1343, %v1342
          %v1356 = vpack.c.b16 %v1345, %v1344
          %v1357 = vpack.c.b16 %v1347, %v1346
          %v1358 = vpack.c.b16 %v1349, %v1348
          %v1359 = vpack.c.b16 %v1351, %v1350
          %v1364 = vunpack.c.l.b16 %v1316
          %v1365 = vunpack.c.l.b16 %v1317
          %v1366 = vunpack.c.l.b16 %v1318
          %v1367 = vunpack.c.l.b16 %v1319
          %v1368 = vpack.c.b16 %v1365, %v1364
          %v1369 = vpack.c.b16 %v1367, %v1366
          %v1372 = vsel %vm338, %v1352, 0
          %v1375 = vsel %vm338, %v1353, 0
          %v1378 = vsel %vm338, %v1354, 0
          %v1381 = vsel %vm338, %v1355, 0
          %v1384 = vsel %vm338, %v1356, 0
          %v1387 = vsel %vm338, %v1357, 0
          %v1390 = vsel %vm338, %v1358, 0
          %v1393 = vsel %vm338, %v1359, 0
          %v1396 = vsel %vm363, %v1369, 0
          %1398 = vmatprep.subr.bf16.mxu0 0
          %1399 = vmatpush1.bf16.msra.mxu0 %v1368
          %1400 = vmatprep.subr.bf16.mxu0 0
          %1401 = vmatpush1.bf16.msra.mxu0 %v1396
          %1402 = vmatprep.subr.bf16.mxu0 0
          %1403 = vmatpush1.bf16.msra.mxu0 0
          %1404 = vmatprep.subr.bf16.mxu0 0
          %1405 = vmatpush1.bf16.msra.mxu0 0
          %1406 = vmatprep.subr.bf16.mxu0 0
          %1407 = vmatpush1.bf16.msra.mxu0 0
          %1408 = vmatprep.subr.bf16.mxu0 0
          %1409 = vmatpush1.bf16.msra.mxu0 0
          %1410 = vmatprep.subr.bf16.mxu0 0
          %1411 = vmatpush1.bf16.msra.mxu0 0
          %1412 = vmatprep.subr.bf16.mxu0 0
          %1413 = vmatpush1.bf16.msra.mxu0 0
          %1414 = vmatprep.subr.bf16.mxu0 0
          %1415 = vmatpush1.bf16.msra.mxu0 0
          %1416 = vmatprep.subr.bf16.mxu0 0
          %1417 = vmatpush1.bf16.msra.mxu0 0
          %1418 = vmatprep.subr.bf16.mxu0 0
          %1419 = vmatpush1.bf16.msra.mxu0 0
          %1420 = vmatprep.subr.bf16.mxu0 0
          %1421 = vmatpush1.bf16.msra.mxu0 0
          %1422 = vmatprep.subr.bf16.mxu0 0
          %1423 = vmatpush1.bf16.msra.mxu0 0
          %1424 = vmatprep.subr.bf16.mxu0 0
          %1425 = vmatpush1.bf16.msra.mxu0 0
          %1426 = vmatprep.subr.bf16.mxu0 0
          %1427 = vmatpush1.bf16.msra.mxu0 0
          %1428 = vmatprep.subr.bf16.mxu0 0
          %1429 = vmatpush1.bf16.msra.mxu0 0
          %1430 = vmatprep.mubr.bf16.mxu0 0
          %1431 = vmatmul.mubr.bf16.gmra.mrb[0].mxu0 %v1372
          %v1432 = vpop.f32.mrb[0].mxu0
          %v1433 = vadd.f32 0.0, %v1432
          %v1434 = vpop.f32.mrb[0].mxu0
          %v1435 = vpop.f32.mrb[0].mxu0
          %v1436 = vadd.f32 0.0, %v1435
          %v1437 = vpop.f32.mrb[0].mxu0
          %1438 = vmatprep.mubr.bf16.mxu0 0
          %1439 = vmatmul.mubr.bf16.gmra.mrb[0].mxu0 %v1375
          %v1440 = vpop.f32.mrb[0].mxu0
          %v1441 = vadd.f32 0.0, %v1440
          %v1442 = vpop.f32.mrb[0].mxu0
          %v1443 = vpop.f32.mrb[0].mxu0
          %v1444 = vadd.f32 0.0, %v1443
          %v1445 = vpop.f32.mrb[0].mxu0
          %1446 = vmatprep.mubr.bf16.mxu0 0
          %1447 = vmatmul.mubr.bf16.gmra.mrb[0].mxu0 %v1378
          %v1448 = vpop.f32.mrb[0].mxu0
          %v1449 = vadd.f32 0.0, %v1448
          %v1450 = vpop.f32.mrb[0].mxu0
          %v1451 = vpop.f32.mrb[0].mxu0
          %v1452 = vadd.f32 0.0, %v1451
          %v1453 = vpop.f32.mrb[0].mxu0
          %1454 = vmatprep.mubr.bf16.mxu0 0
          %1455 = vmatmul.mubr.bf16.gmra.mrb[0].mxu0 %v1381
          %v1456 = vpop.f32.mrb[0].mxu0
          %v1457 = vadd.f32 0.0, %v1456
          %v1458 = vpop.f32.mrb[0].mxu0
          %v1459 = vpop.f32.mrb[0].mxu0
          %v1460 = vadd.f32 0.0, %v1459
          %v1461 = vpop.f32.mrb[0].mxu0
          %1462 = vmatprep.mubr.bf16.mxu0 0
          %1463 = vmatmul.mubr.bf16.gmra.mrb[0].mxu0 %v1384
          %v1464 = vpop.f32.mrb[0].mxu0
          %v1465 = vadd.f32 0.0, %v1464
          %v1466 = vpop.f32.mrb[0].mxu0
          %v1467 = vpop.f32.mrb[0].mxu0
          %v1468 = vadd.f32 0.0, %v1467
          %v1469 = vpop.f32.mrb[0].mxu0
          %1470 = vmatprep.mubr.bf16.mxu0 0
          %1471 = vmatmul.mubr.bf16.gmra.mrb[0].mxu0 %v1387
          %v1472 = vpop.f32.mrb[0].mxu0
          %v1473 = vadd.f32 0.0, %v1472
          %v1474 = vpop.f32.mrb[0].mxu0
          %v1475 = vpop.f32.mrb[0].mxu0
          %v1476 = vadd.f32 0.0, %v1475
          %v1477 = vpop.f32.mrb[0].mxu0
          %1478 = vmatprep.mubr.bf16.mxu0 0
          %1479 = vmatmul.mubr.bf16.gmra.mrb[0].mxu0 %v1390
          %v1480 = vpop.f32.mrb[0].mxu0
          %v1481 = vadd.f32 0.0, %v1480
          %v1482 = vpop.f32.mrb[0].mxu0
          %v1483 = vpop.f32.mrb[0].mxu0
          %v1484 = vadd.f32 0.0, %v1483
          %v1485 = vpop.f32.mrb[0].mxu0
          %1486 = vmatprep.mubr.bf16.mxu0 0
          %1487 = vmatmul.mubr.bf16.gmra.mrb[0].mxu0 %v1393
          %v1488 = vpop.f32.mrb[0].mxu0
          %v1489 = vadd.f32 0.0, %v1488
          %v1490 = vpop.f32.mrb[0].mxu0
          %v1491 = vpop.f32.mrb[0].mxu0
          %v1492 = vadd.f32 0.0, %v1491
          %v1493 = vpop.f32.mrb[0].mxu0
          %1494 = vdwg.mxu0
          %v1495 = vadd.f32 %v1277, %v1433
          %v1496 = vadd.f32 %v1278, %v1436
          %v1497 = vadd.f32 %v1279, %v1441
          %v1498 = vadd.f32 %v1280, %v1444
          %v1499 = vadd.f32 %v1281, %v1449
          %v1500 = vadd.f32 %v1282, %v1452
          %v1501 = vadd.f32 %v1283, %v1457
          %v1502 = vadd.f32 %v1284, %v1460
          %v1503 = vadd.f32 %v1285, %v1465
          %v1504 = vadd.f32 %v1286, %v1468
          %v1505 = vadd.f32 %v1287, %v1473
          %v1506 = vadd.f32 %v1288, %v1476
          %v1507 = vadd.f32 %v1289, %v1481
          %v1508 = vadd.f32 %v1290, %v1484
          %v1509 = vadd.f32 %v1291, %v1489
          %v1510 = vadd.f32 %v1292, %v1492
          %s1511 = sadd.s32 %s234, 6
          %s1512 = smul.u32 %s1511, 16
          %s1513 = sshra.s32 %s1512, 3
          %s1514 = sand.u32 %s1512, 7
          %s1515 = smul.addr %s1513, 4
          %s1516 = scalar_lea.vmem %s215, %s1515
          %v1517 = vld [vmem:[%s1516] sm:$0xf]
          %v1518 = vld [vmem:[%s1516 + $0x4] sm:$0xf]
          %v1519 = vld [vmem:[%s1516 + $0x8] sm:$0xf]
          %v1520 = vld [vmem:[%s1516 + $0xc] sm:$0xf]
          %v1521 = vld [vmem:[%s1516 + $0x10] sm:$0xf]
          %v1522 = vld [vmem:[%s1516 + $0x14] sm:$0xf]
          %v1523 = vld [vmem:[%s1516 + $0x18] sm:$0xf]
          %v1524 = vld [vmem:[%s1516 + $0x1c] sm:$0xf]
          %v1525 = vld [vmem:[%s1516 + $0x20] sm:$0xf]
          %v1526 = vld [vmem:[%s1516 + $0x24] sm:$0xf]
          %v1527 = vld [vmem:[%s1516 + $0x28] sm:$0xf]
          %v1528 = vld [vmem:[%s1516 + $0x2c] sm:$0xf]
          %v1529 = vld [vmem:[%s1516 + $0x30] sm:$0xf]
          %v1530 = vld [vmem:[%s1516 + $0x34] sm:$0xf]
          %v1531 = vld [vmem:[%s1516 + $0x38] sm:$0xf]
          %v1532 = vld [vmem:[%s1516 + $0x3c] sm:$0xf]
          %s1533 = scalar_lea.vmem %s219, 96
          %v1534 = vld [vmem:[%s1533] sm:$0xf]
          %v1535 = vld [vmem:[%s1533 + $0x4] sm:$0xf]
          %v1536 = vld [vmem:[%s1533 + $0x8] sm:$0xf]
          %v1537 = vld [vmem:[%s1533 + $0xc] sm:$0x3]
          %v1554 = vunpack.c.l.b16 %v1517
          %v1555 = vunpack.c.l.b16 %v1518
          %v1556 = vunpack.c.l.b16 %v1519
          %v1557 = vunpack.c.l.b16 %v1520
          %v1558 = vunpack.c.l.b16 %v1521
          %v1559 = vunpack.c.l.b16 %v1522
          %v1560 = vunpack.c.l.b16 %v1523
          %v1561 = vunpack.c.l.b16 %v1524
          %v1562 = vunpack.c.l.b16 %v1525
          %v1563 = vunpack.c.l.b16 %v1526
          %v1564 = vunpack.c.l.b16 %v1527
          %v1565 = vunpack.c.l.b16 %v1528
          %v1566 = vunpack.c.l.b16 %v1529
          %v1567 = vunpack.c.l.b16 %v1530
          %v1568 = vunpack.c.l.b16 %v1531
          %v1569 = vunpack.c.l.b16 %v1532
          %v1570 = vpack.c.b16 %v1555, %v1554
          %v1571 = vpack.c.b16 %v1557, %v1556
          %v1572 = vpack.c.b16 %v1559, %v1558
          %v1573 = vpack.c.b16 %v1561, %v1560
          %v1574 = vpack.c.b16 %v1563, %v1562
          %v1575 = vpack.c.b16 %v1565, %v1564
          %v1576 = vpack.c.b16 %v1567, %v1566
          %v1577 = vpack.c.b16 %v1569, %v1568
          %v1582 = vunpack.c.l.b16 %v1534
          %v1583 = vunpack.c.l.b16 %v1535
          %v1584 = vunpack.c.l.b16 %v1536
          %v1585 = vunpack.c.l.b16 %v1537
          %v1586 = vpack.c.b16 %v1583, %v1582
          %v1587 = vpack.c.b16 %v1585, %v1584
          %v1590 = vsel %vm338, %v1570, 0
          %v1593 = vsel %vm338, %v1571, 0
          %v1596 = vsel %vm338, %v1572, 0
          %v1599 = vsel %vm338, %v1573, 0
          %v1602 = vsel %vm338, %v1574, 0
          %v1605 = vsel %vm338, %v1575, 0
          %v1608 = vsel %vm338, %v1576, 0
          %v1611 = vsel %vm338, %v1577, 0
          %v1614 = vsel %vm363, %v1587, 0
          %1616 = vmatprep.subr.bf16.mxu0 0
          %1617 = vmatpush1.bf16.msra.mxu0 %v1586
          %1618 = vmatprep.subr.bf16.mxu0 0
          %1619 = vmatpush1.bf16.msra.mxu0 %v1614
          %1620 = vmatprep.subr.bf16.mxu0 0
          %1621 = vmatpush1.bf16.msra.mxu0 0
          %1622 = vmatprep.subr.bf16.mxu0 0
          %1623 = vmatpush1.bf16.msra.mxu0 0
          %1624 = vmatprep.subr.bf16.mxu0 0
          %1625 = vmatpush1.bf16.msra.mxu0 0
          %1626 = vmatprep.subr.bf16.mxu0 0
          %1627 = vmatpush1.bf16.msra.mxu0 0
          %1628 = vmatprep.subr.bf16.mxu0 0
          %1629 = vmatpush1.bf16.msra.mxu0 0
          %1630 = vmatprep.subr.bf16.mxu0 0
          %1631 = vmatpush1.bf16.msra.mxu0 0
          %1632 = vmatprep.subr.bf16.mxu0 0
          %1633 = vmatpush1.bf16.msra.mxu0 0
          %1634 = vmatprep.subr.bf16.mxu0 0
          %1635 = vmatpush1.bf16.msra.mxu0 0
          %1636 = vmatprep.subr.bf16.mxu0 0
          %1637 = vmatpush1.bf16.msra.mxu0 0
          %1638 = vmatprep.subr.bf16.mxu0 0
          %1639 = vmatpush1.bf16.msra.mxu0 0
          %1640 = vmatprep.subr.bf16.mxu0 0
          %1641 = vmatpush1.bf16.msra.mxu0 0
          %1642 = vmatprep.subr.bf16.mxu0 0
          %1643 = vmatpush1.bf16.msra.mxu0 0
          %1644 = vmatprep.subr.bf16.mxu0 0
          %1645 = vmatpush1.bf16.msra.mxu0 0
          %1646 = vmatprep.subr.bf16.mxu0 0
          %1647 = vmatpush1.bf16.msra.mxu0 0
          %1648 = vmatprep.mubr.bf16.mxu0 0
          %1649 = vmatmul.mubr.bf16.gmra.mrb[0].mxu0 %v1590
          %v1650 = vpop.f32.mrb[0].mxu0
          %v1651 = vadd.f32 0.0, %v1650
          %v1652 = vpop.f32.mrb[0].mxu0
          %v1653 = vpop.f32.mrb[0].mxu0
          %v1654 = vadd.f32 0.0, %v1653
          %v1655 = vpop.f32.mrb[0].mxu0
          %1656 = vmatprep.mubr.bf16.mxu0 0
          %1657 = vmatmul.mubr.bf16.gmra.mrb[0].mxu0 %v1593
          %v1658 = vpop.f32.mrb[0].mxu0
          %v1659 = vadd.f32 0.0, %v1658
          %v1660 = vpop.f32.mrb[0].mxu0
          %v1661 = vpop.f32.mrb[0].mxu0
          %v1662 = vadd.f32 0.0, %v1661
          %v1663 = vpop.f32.mrb[0].mxu0
          %1664 = vmatprep.mubr.bf16.mxu0 0
          %1665 = vmatmul.mubr.bf16.gmra.mrb[0].mxu0 %v1596
          %v1666 = vpop.f32.mrb[0].mxu0
          %v1667 = vadd.f32 0.0, %v1666
          %v1668 = vpop.f32.mrb[0].mxu0
          %v1669 = vpop.f32.mrb[0].mxu0
          %v1670 = vadd.f32 0.0, %v1669
          %v1671 = vpop.f32.mrb[0].mxu0
          %1672 = vmatprep.mubr.bf16.mxu0 0
          %1673 = vmatmul.mubr.bf16.gmra.mrb[0].mxu0 %v1599
          %v1674 = vpop.f32.mrb[0].mxu0
          %v1675 = vadd.f32 0.0, %v1674
          %v1676 = vpop.f32.mrb[0].mxu0
          %v1677 = vpop.f32.mrb[0].mxu0
          %v1678 = vadd.f32 0.0, %v1677
          %v1679 = vpop.f32.mrb[0].mxu0
          %1680 = vmatprep.mubr.bf16.mxu0 0
          %1681 = vmatmul.mubr.bf16.gmra.mrb[0].mxu0 %v1602
          %v1682 = vpop.f32.mrb[0].mxu0
          %v1683 = vadd.f32 0.0, %v1682
          %v1684 = vpop.f32.mrb[0].mxu0
          %v1685 = vpop.f32.mrb[0].mxu0
          %v1686 = vadd.f32 0.0, %v1685
          %v1687 = vpop.f32.mrb[0].mxu0
          %1688 = vmatprep.mubr.bf16.mxu0 0
          %1689 = vmatmul.mubr.bf16.gmra.mrb[0].mxu0 %v1605
          %v1690 = vpop.f32.mrb[0].mxu0
          %v1691 = vadd.f32 0.0, %v1690
          %v1692 = vpop.f32.mrb[0].mxu0
          %v1693 = vpop.f32.mrb[0].mxu0
          %v1694 = vadd.f32 0.0, %v1693
          %v1695 = vpop.f32.mrb[0].mxu0
          %1696 = vmatprep.mubr.bf16.mxu0 0
          %1697 = vmatmul.mubr.bf16.gmra.mrb[0].mxu0 %v1608
          %v1698 = vpop.f32.mrb[0].mxu0
          %v1699 = vadd.f32 0.0, %v1698
          %v1700 = vpop.f32.mrb[0].mxu0
          %v1701 = vpop.f32.mrb[0].mxu0
          %v1702 = vadd.f32 0.0, %v1701
          %v1703 = vpop.f32.mrb[0].mxu0
          %1704 = vmatprep.mubr.bf16.mxu0 0
          %1705 = vmatmul.mubr.bf16.gmra.mrb[0].mxu0 %v1611
          %v1706 = vpop.f32.mrb[0].mxu0
          %v1707 = vadd.f32 0.0, %v1706
          %v1708 = vpop.f32.mrb[0].mxu0
          %v1709 = vpop.f32.mrb[0].mxu0
          %v1710 = vadd.f32 0.0, %v1709
          %v1711 = vpop.f32.mrb[0].mxu0
          %1712 = vdwg.mxu0
          %v1713 = vadd.f32 %v1495, %v1651
          %v1714 = vadd.f32 %v1496, %v1654
          %v1715 = vadd.f32 %v1497, %v1659
          %v1716 = vadd.f32 %v1498, %v1662
          %v1717 = vadd.f32 %v1499, %v1667
          %v1718 = vadd.f32 %v1500, %v1670
          %v1719 = vadd.f32 %v1501, %v1675
          %v1720 = vadd.f32 %v1502, %v1678
          %v1721 = vadd.f32 %v1503, %v1683
          %v1722 = vadd.f32 %v1504, %v1686
          %v1723 = vadd.f32 %v1505, %v1691
          %v1724 = vadd.f32 %v1506, %v1694
          %v1725 = vadd.f32 %v1507, %v1699
          %v1726 = vadd.f32 %v1508, %v1702
          %v1727 = vadd.f32 %v1509, %v1707
          %v1728 = vadd.f32 %v1510, %v1710
          %v1730 = vlaneseq
          %v1731 = vshrl.u32 %v1730, 7
          %v1732 = vsub.s32 0, %v1731
          %v1733 = vrot.slane %v225, %v1732
          %v1735 = vadd.f32 %v1713, %v1733
          %v1736 = vadd.f32 %v1714, %v1733
          %v1737 = vadd.f32 %v1715, %v1733
          %v1738 = vadd.f32 %v1716, %v1733
          %v1739 = vadd.f32 %v1717, %v1733
          %v1740 = vadd.f32 %v1718, %v1733
          %v1741 = vadd.f32 %v1719, %v1733
          %v1742 = vadd.f32 %v1720, %v1733
          %v1743 = vadd.f32 %v1721, %v1733
          %v1744 = vadd.f32 %v1722, %v1733
          %v1745 = vadd.f32 %v1723, %v1733
          %v1746 = vadd.f32 %v1724, %v1733
          %v1747 = vadd.f32 %v1725, %v1733
          %v1748 = vadd.f32 %v1726, %v1733
          %v1749 = vadd.f32 %v1727, %v1733
          %v1750 = vadd.f32 %v1728, %v1733
          %v1751 = vmax.f32 %v1735, 0.0
          %v1752 = vmax.f32 %v1736, 0.0
          %v1753 = vmax.f32 %v1737, 0.0
          %v1754 = vmax.f32 %v1738, 0.0
          %v1755 = vmax.f32 %v1739, 0.0
          %v1756 = vmax.f32 %v1740, 0.0
          %v1757 = vmax.f32 %v1741, 0.0
          %v1758 = vmax.f32 %v1742, 0.0
          %v1759 = vmax.f32 %v1743, 0.0
          %v1760 = vmax.f32 %v1744, 0.0
          %v1761 = vmax.f32 %v1745, 0.0
          %v1762 = vmax.f32 %v1746, 0.0
          %v1763 = vmax.f32 %v1747, 0.0
          %v1764 = vmax.f32 %v1748, 0.0
          %v1765 = vmax.f32 %v1749, 0.0
          %v1766 = vmax.f32 %v1750, 0.0
          %s1767 = smul.u32 %s227, 128
          %s1768 = scalar_lea.vmem %s210, %s1767 [#allocation2]
          %1769 = vst [vmem:[%s1768] sm:$0xff] %v1751
          %1770 = vst [vmem:[%s1768 + $0x8] sm:$0xff] %v1752
          %1771 = vst [vmem:[%s1768 + $0x10] sm:$0xff] %v1753
          %1772 = vst [vmem:[%s1768 + $0x18] sm:$0xff] %v1754
          %1773 = vst [vmem:[%s1768 + $0x20] sm:$0xff] %v1755
          %1774 = vst [vmem:[%s1768 + $0x28] sm:$0xff] %v1756
          %1775 = vst [vmem:[%s1768 + $0x30] sm:$0xff] %v1757
          %1776 = vst [vmem:[%s1768 + $0x38] sm:$0xff] %v1758
          %1777 = vst [vmem:[%s1768 + $0x40] sm:$0xff] %v1759
          %1778 = vst [vmem:[%s1768 + $0x48] sm:$0xff] %v1760
          %1779 = vst [vmem:[%s1768 + $0x50] sm:$0xff] %v1761
          %1780 = vst [vmem:[%s1768 + $0x58] sm:$0xff] %v1762
          %1781 = vst [vmem:[%s1768 + $0x60] sm:$0xff] %v1763
          %1782 = vst [vmem:[%s1768 + $0x68] sm:$0xff] %v1764
          %1783 = vst [vmem:[%s1768 + $0x70] sm:$0xff] %v1765
          %1784 = vst [vmem:[%s1768 + $0x78] sm:$0xff] %v1766
        $region37: #{tpu_custom_call.1} parent=31 // loop_footer
          %s231 = sadd.s32 1, %s227
        $region38: #{tpu_custom_call.1} parent=31 // loop_footer_branch
          %226 = sbr.rel target = $region34
        $region39: #{tpu_custom_call.1} parent=31 // loop_exit
          _
        %s1785 = sand.u32 %s126, 1
        %s1786 = scalar_lea.sflag [#allocation3], %s1785
        %s1787 = sand.u32 %s126, 1
        %s1788 = smul.addr %s1787, 256
        %s1789 = scalar_lea.vmem [#allocation2], %s1788
        // Predicated region
        $region40: #{tpu_custom_call.1} parent=31 // pred_check
          %p1790 = pneg %p136
        $region41: #{tpu_custom_call.1} parent=31 // pred_check_branch
          %1792 = sbr.rel (%p1790) target = $region43
        $region42: #{tpu_custom_call.1} parent=31 // pred_region
          %s1793 = smul.u32 32, %s24
          %s1795 = ssub.s32 4096, 4096
          %1796 = vsyncadd %s1786, %s1795
          %s1797 = sadd.s32 %s23, %s1793
          %s1798 = smul.addr %s22, 32
          %s1799 = sadd.s32 %s1797, %s1798
          %s1800 = smul.addr %s1799, 128
          %s1801 = scalar_lea.hbm %s3, %s1800
          %s1802 = sshll.u32 %s1789, 4
          %s1803 = int_to_ptr.vmem [resolvable:$true] %s1802
          %1808 = dma.vmem_to_hbm [thread:$0]  %s1803, 4096, %s1801, %s1786, 128, 128, 8
        $region43: #{tpu_custom_call.1} parent=31 // pred_fallthru
          _
      $region32: #{tpu_custom_call.1} parent=5 // pred_fallthru
        _
      %p1809 = scmp.le.s32.totalorder 2, %s12
      // Predicated region
      $region44: #{tpu_custom_call.1} parent=5 // pred_check
        %p1810 = pneg %p1809
      $region45: #{tpu_custom_call.1} parent=5 // pred_check_branch
        %1812 = sbr.rel (%p1810) target = $region47
      $region46: #{tpu_custom_call.1} parent=5 // pred_region
        %s1813 = ssub.s32 %s12, 2
        // Predicated region
        $region48: #{tpu_custom_call.1} parent=46 // pred_check
          %p1814 = pneg %p142
        $region49: #{tpu_custom_call.1} parent=46 // pred_check_branch
          %1816 = sbr.rel (%p1814) target = $region51
        $region50: #{tpu_custom_call.1} parent=46 // pred_region
          %s1817 = sand.u32 %s127, 1
          %s1818 = scalar_lea.sflag [#allocation3], %s1817
          %s1819 = sand.u32 %s127, 1
          %s1820 = smul.addr %s1819, 256
          %s1821 = scalar_lea.vmem [#allocation2], %s1820
          %1822 = dma.done %s1818, 4096
        $region51: #{tpu_custom_call.1} parent=46 // pred_fallthru
          _
      $region47: #{tpu_custom_call.1} parent=5 // pred_fallthru
        _
    $region6: #{tpu_custom_call.1} parent=1 // loop_footer
      %s16 = sadd.s32 1, %s12
    $region7: #{tpu_custom_call.1} parent=1 // loop_footer_branch
      %11 = sbr.rel target = $region3
    $region8: #{tpu_custom_call.1} parent=1 // loop_exit
      _
    %1823 = vsyncpa [#allocation3], 1
    %s1824 = scalar_lea.sflag [#allocation3], 1
    %1825 = vsyncpa %s1824, 1

</llo_original>
